<compile_context>
chip_gen: v7x
topology: tpu7x:2x2x1
jax: 0.10.0
libtpu: 0.0.40
codegen_flags: <defaults>
</compile_context>

<pallas_src>
import functools

import jax
import jax.numpy as jnp
from jax.experimental import pallas as pl
from jax.experimental.pallas import tpu as pltpu


def autopad(k, p=None):
    if p is None:
        p = k // 2 if isinstance(k, int) else [x // 2 for x in k]
    return p


def _round_up(x, m):
    return (x + m - 1) // m * m


def _conv_tile(x_ref, w_ref, *, k, s, tile_h, w_out, c2pad):
    """Conv of one (band_h, W_pad, C1) row band -> (tile_h*w_out, c2pad) f32."""
    c1 = x_ref.shape[-1]
    rows = tile_h * w_out
    acc = jnp.zeros((rows, c2pad), jnp.float32)
    band = None
    if s != 1:
        # TODO(synk): for s > 1 push the stride into the DMA/index_map instead
        # of strided in-register slicing.
        band = x_ref[0, 0]
    # TODO(synk): could im2col to a single K=k*k*C1 matmul; with tiny C1 the
    # kernel is HBM-bound either way, so keep the simple per-tap MXU loop.
    for kh in range(k):
        for kw in range(k):
            if s == 1:
                patch = x_ref[0, 0, kh:kh + tile_h, kw:kw + w_out, :]
            else:
                patch = band[kh:kh + (tile_h - 1) * s + 1:s,
                             kw:kw + (w_out - 1) * s + 1:s, :]
            lhs = patch.reshape(rows, c1).astype(w_ref.dtype)   # bf16 operands
            acc = acc + jnp.dot(lhs, w_ref[kh, kw],
                                preferred_element_type=jnp.float32)
    return acc


def _stats_kernel(x_ref, w_ref, stats_ref, *, k, s, tile_h, w_out, h_out, c2pad):
    """Pass 1: per-tile partial sum / sum-of-squares of the conv output."""
    acc = _conv_tile(x_ref, w_ref, k=k, s=s, tile_h=tile_h, w_out=w_out,
                     c2pad=c2pad)
    if h_out % tile_h != 0:
        # Mask output rows past h_out (only when the last tile over-hangs).
        t = pl.program_id(1)
        row = jax.lax.broadcasted_iota(jnp.int32, (tile_h * w_out, 1), 0)
        valid = (t * tile_h + row // w_out) < h_out
        acc = jnp.where(valid, acc, 0.0)
    s1 = jnp.sum(acc, axis=0, keepdims=True)            # (1, c2pad)
    s2 = jnp.sum(acc * acc, axis=0, keepdims=True)      # (1, c2pad)
    stats_ref[0, 0] = jnp.concatenate([s1, s2], axis=0)  # (2, c2pad)


def _norm_silu_kernel(x_ref, w_ref, ss_ref, o_ref, *, k, s, tile_h, w_out,
                      c2, c2pad):
    """Pass 2: recompute conv tile, apply BN affine + SiLU, store lane-dense."""
    acc = _conv_tile(x_ref, w_ref, k=k, s=s, tile_h=tile_h, w_out=w_out,
                     c2pad=c2pad)
    # Per-channel affine (channels on the lane axis -> clean broadcast).
    y = acc * ss_ref[0:1, :] + ss_ref[1:2, :]            # (rows, c2pad)
    # Channel-major for lane-dense stores; drop padded channels; SiLU on the
    # real channels only (16x fewer EUP sigmoids).
    y = y.T[:c2, :]                                      # (c2, rows)
    y = y * jax.nn.sigmoid(y)
    o_ref[0, 0] = y.astype(o_ref.dtype)


def conv_bn_silu(x_nchw, weight_oihw, gamma, beta, *, k=1, s=1, p=None,
                 eps=1e-5, tile_h=8):
    """Forward pass of `Conv`. Input/output are NCHW like the PyTorch module."""
    # TODO(synk): groups > 1 not implemented (module default g=1).
    p = autopad(k, p)
    n, c1, h, w = x_nchw.shape
    c2 = weight_oihw.shape[0]
    h_out = (h + 2 * p - k) // s + 1
    w_out = (w + 2 * p - k) // s + 1
    c2pad = _round_up(c2, 128)

    # Row tiling of the output; keep per-tile accumulator modest for VMEM
    # (also within the v7x 64 MiB / 32 MiB-scoped budget).
    tile_h = max(1, min(tile_h, h_out, max(1, 1024 // w_out)))
    n_ht = -(-h_out // tile_h)                     # cdiv
    band_h = (tile_h - 1) * s + k                  # input rows per tile (halo)
    rows = tile_h * w_out
    wp = w + 2 * p

    # ---- glue (plain JAX): layout, padding, halo bands, weight prep ---------
    # TODO(synk): pad+transpose+band-gather still costs one extra HBM copy of
    # the activation; could be folded into the kernel with edge-tap masking.
    x_nhwc = jnp.transpose(x_nchw, (0, 2, 3, 1)).astype(jnp.float32)
    h_needed = (n_ht * tile_h - 1) * s + k
    pad_bot = max(0, h_needed - (h + p))
    x_pad = jnp.pad(x_nhwc, ((0, 0), (p, pad_bot), (p, p), (0, 0)))
    row_idx = (jnp.arange(n_ht) * (tile_h * s))[:, None] + jnp.arange(band_h)[None, :]
    x_bands = x_pad[:, row_idx, :, :]              # (N, n_ht, band_h, wp, C1)

    # Weight: OIHW -> HWIO, pad C2 to a multiple of 128, bf16 for the MXU.
    w_hwio = jnp.transpose(weight_oihw, (2, 3, 1, 0))
    w_mx = jnp.pad(w_hwio, ((0, 0), (0, 0), (0, 0), (0, c2pad - c2))
                   ).astype(jnp.bfloat16)

    cparams = pltpu.CompilerParams(
        dimension_semantics=("parallel", "parallel"),
        vmem_limit_bytes=32 * 1024 * 1024)

    x_spec = pl.BlockSpec((1, 1, band_h, wp, c1), lambda b, t: (b, t, 0, 0, 0))
    w_spec = pl.BlockSpec((k, k, c1, c2pad), lambda b, t: (0, 0, 0, 0))

    # ---- pass 1: conv + per-tile partial BN statistics -----------------------
    stats = pl.pallas_call(
        functools.partial(_stats_kernel, k=k, s=s, tile_h=tile_h, w_out=w_out,
                          h_out=h_out, c2pad=c2pad),
        out_shape=jax.ShapeDtypeStruct((n, n_ht, 2, c2pad), jnp.float32),
        grid=(n, n_ht),
        in_specs=[x_spec, w_spec],
        out_specs=pl.BlockSpec((1, 1, 2, c2pad), lambda b, t: (b, t, 0, 0)),
        compiler_params=cparams,
    )(x_bands, w_mx)

    # Global batch statistics -> per-channel scale/shift (tiny, plain JAX).
    # TODO(synk): E[x^2]-mean^2 can cancel for huge activations; a centered
    # (Welford-style) second pass would be safer if that ever matters.
    count = n * h_out * w_out
    tot = jnp.sum(stats, axis=(0, 1))              # (2, c2pad)
    mean = tot[0] / count
    var = jnp.maximum(tot[1] / count - mean * mean, 0.0)   # biased var (train)
    gamma_p = jnp.pad(gamma.astype(jnp.float32).reshape(-1), (0, c2pad - c2))
    beta_p = jnp.pad(beta.astype(jnp.float32).reshape(-1), (0, c2pad - c2))
    scale = gamma_p * jax.lax.rsqrt(var + eps)
    shift = beta_p - mean * scale
    ss = jnp.stack([scale, shift], axis=0)         # (2, c2pad)

    # ---- pass 2: recompute conv, BN affine + SiLU, lane-dense output --------
    out = pl.pallas_call(
        functools.partial(_norm_silu_kernel, k=k, s=s, tile_h=tile_h,
                          w_out=w_out, c2=c2, c2pad=c2pad),
        out_shape=jax.ShapeDtypeStruct((n, n_ht, c2, rows), jnp.float32),
        grid=(n, n_ht),
        in_specs=[x_spec, w_spec,
                  pl.BlockSpec((2, c2pad), lambda b, t: (0, 0))],
        out_specs=pl.BlockSpec((1, 1, c2, rows), lambda b, t: (b, t, 0, 0)),
        compiler_params=cparams,
    )(x_bands, w_mx, ss)

    # (N, n_ht, C2, tile_h*W_out) -> NCHW, dropping any over-tiled rows.
    out = out.reshape(n, n_ht, c2, tile_h, w_out)
    out = jnp.transpose(out, (0, 2, 1, 3, 4)).reshape(n, c2, n_ht * tile_h, w_out)
    return out[:, :, :h_out, :]


if __name__ == "__main__":
    # Module config: Conv(c1=4, c2=8, k=3, s=1) -> pad = 1
    N, C1, C2, H, W, K, S = 2, 4, 8, 16, 16, 3, 1

    key = jax.random.PRNGKey(0)
    kx, kw = jax.random.split(key)

    x = jax.random.normal(kx, (N, C1, H, W), dtype=jnp.float32)

    # Deterministic parameter init (shapes per nn.Conv2d / nn.BatchNorm2d).
    fan_in = C1 * K * K
    weight = jax.random.normal(kw, (C2, C1, K, K), dtype=jnp.float32) * (fan_in ** -0.5)
    gamma = jnp.ones((C2,), jnp.float32)   # BN weight
    beta = jnp.zeros((C2,), jnp.float32)   # BN bias

    out = conv_bn_silu(x, weight, gamma, beta, k=K, s=S)
    out = jax.block_until_ready(out)
    assert out.shape == (N, C2, H, W), out.shape
    assert bool(jnp.all(jnp.isfinite(out)))
    print("KERNEL_OK")
</pallas_src>

<mosaic_0001>
module attributes {stable_mosaic.version = 11 : i64} {
  func.func @_stats_kernel(%arg0: i32, %arg1: i32, %arg2: memref<1x1x10x18x4xf32, #tpu.memory_space<vmem>>, %arg3: memref<3x3x4x128xbf16, #tpu.memory_space<vmem>>, %arg4: memref<1x1x2x128xf32, #tpu.memory_space<vmem>>) attributes {dimension_semantics = [#tpu.dimension_semantics<parallel>, #tpu.dimension_semantics<parallel>], iteration_bounds = array<i64: 2, 2>, scalar_prefetch = 0 : i64, scratch_operands = 0 : i64, tpu.core_type = #tpu.core_type<tc>, window_params = [{transform_indices = @transform_0, window_bounds = array<i64: 1, 1, 10, 18, 4>}, {pipeline_mode = #tpu.pipeline_mode<synchronous>, transform_indices = @transform_1, window_bounds = array<i64: 3, 3, 4, 128>}, {transform_indices = @transform_2, window_bounds = array<i64: 1, 1, 2, 128>}]} {
    %cst = arith.constant 0.000000e+00 : f32
    %0 = vector.broadcast %cst : f32 to vector<128x128xf32>
    %c0 = arith.constant 0 : index
    %c0_0 = arith.constant 0 : index
    %c0_1 = arith.constant 0 : index
    %c0_2 = arith.constant 0 : index
    %c0_3 = arith.constant 0 : index
    %1 = vector.load %arg2[%c0, %c0_0, %c0_1, %c0_2, %c0_3] : memref<1x1x10x18x4xf32, #tpu.memory_space<vmem>>, vector<1x1x8x16x4xf32>
    %2 = vector.shape_cast %1 : vector<1x1x8x16x4xf32> to vector<8x16x4xf32>
    %3 = vector.shape_cast %2 : vector<8x16x4xf32> to vector<128x4xf32>
    %4 = arith.truncf %3 : vector<128x4xf32> to vector<128x4xbf16>
    %c0_4 = arith.constant 0 : index
    %c0_5 = arith.constant 0 : index
    %c0_6 = arith.constant 0 : index
    %c0_7 = arith.constant 0 : index
    %5 = vector.load %arg3[%c0_4, %c0_5, %c0_6, %c0_7] : memref<3x3x4x128xbf16, #tpu.memory_space<vmem>>, vector<1x1x4x128xbf16>
    %6 = vector.shape_cast %5 : vector<1x1x4x128xbf16> to vector<4x128xbf16>
    %cst_8 = arith.constant dense<0.000000e+00> : vector<128x128xf32>
    %7 = tpu.matmul %4, %6, %cst_8 {dimension_numbers = #tpu.dot_dimension_numbers<[1], [0], [0], [1], [0, 0, 1, 1], [], []>} : vector<128x4xbf16>, vector<4x128xbf16>, vector<128x128xf32> -> vector<128x128xf32>
    %8 = arith.addf %0, %7 : vector<128x128xf32>
    %c0_9 = arith.constant 0 : index
    %c0_10 = arith.constant 0 : index
    %c0_11 = arith.constant 0 : index
    %c1 = arith.constant 1 : index
    %c0_12 = arith.constant 0 : index
    %9 = vector.load %arg2[%c0_9, %c0_10, %c0_11, %c1, %c0_12] : memref<1x1x10x18x4xf32, #tpu.memory_space<vmem>>, vector<1x1x8x16x4xf32>
    %10 = vector.shape_cast %9 : vector<1x1x8x16x4xf32> to vector<8x16x4xf32>
    %11 = vector.shape_cast %10 : vector<8x16x4xf32> to vector<128x4xf32>
    %12 = arith.truncf %11 : vector<128x4xf32> to vector<128x4xbf16>
    %c0_13 = arith.constant 0 : index
    %c1_14 = arith.constant 1 : index
    %c0_15 = arith.constant 0 : index
    %c0_16 = arith.constant 0 : index
    %13 = vector.load %arg3[%c0_13, %c1_14, %c0_15, %c0_16] : memref<3x3x4x128xbf16, #tpu.memory_space<vmem>>, vector<1x1x4x128xbf16>
    %14 = vector.shape_cast %13 : vector<1x1x4x128xbf16> to vector<4x128xbf16>
    %cst_17 = arith.constant dense<0.000000e+00> : vector<128x128xf32>
    %15 = tpu.matmul %12, %14, %cst_17 {dimension_numbers = #tpu.dot_dimension_numbers<[1], [0], [0], [1], [0, 0, 1, 1], [], []>} : vector<128x4xbf16>, vector<4x128xbf16>, vector<128x128xf32> -> vector<128x128xf32>
    %16 = arith.addf %8, %15 : vector<128x128xf32>
    %c0_18 = arith.constant 0 : index
    %c0_19 = arith.constant 0 : index
    %c0_20 = arith.constant 0 : index
    %c2 = arith.constant 2 : index
    %c0_21 = arith.constant 0 : index
    %17 = vector.load %arg2[%c0_18, %c0_19, %c0_20, %c2, %c0_21] : memref<1x1x10x18x4xf32, #tpu.memory_space<vmem>>, vector<1x1x8x16x4xf32>
    %18 = vector.shape_cast %17 : vector<1x1x8x16x4xf32> to vector<8x16x4xf32>
    %19 = vector.shape_cast %18 : vector<8x16x4xf32> to vector<128x4xf32>
    %20 = arith.truncf %19 : vector<128x4xf32> to vector<128x4xbf16>
    %c0_22 = arith.constant 0 : index
    %c2_23 = arith.constant 2 : index
    %c0_24 = arith.constant 0 : index
    %c0_25 = arith.constant 0 : index
    %21 = vector.load %arg3[%c0_22, %c2_23, %c0_24, %c0_25] : memref<3x3x4x128xbf16, #tpu.memory_space<vmem>>, vector<1x1x4x128xbf16>
    %22 = vector.shape_cast %21 : vector<1x1x4x128xbf16> to vector<4x128xbf16>
    %cst_26 = arith.constant dense<0.000000e+00> : vector<128x128xf32>
    %23 = tpu.matmul %20, %22, %cst_26 {dimension_numbers = #tpu.dot_dimension_numbers<[1], [0], [0], [1], [0, 0, 1, 1], [], []>} : vector<128x4xbf16>, vector<4x128xbf16>, vector<128x128xf32> -> vector<128x128xf32>
    %24 = arith.addf %16, %23 : vector<128x128xf32>
    %c0_27 = arith.constant 0 : index
    %c0_28 = arith.constant 0 : index
    %c1_29 = arith.constant 1 : index
    %c0_30 = arith.constant 0 : index
    %c0_31 = arith.constant 0 : index
    %25 = vector.load %arg2[%c0_27, %c0_28, %c1_29, %c0_30, %c0_31] : memref<1x1x10x18x4xf32, #tpu.memory_space<vmem>>, vector<1x1x8x16x4xf32>
    %26 = vector.shape_cast %25 : vector<1x1x8x16x4xf32> to vector<8x16x4xf32>
    %27 = vector.shape_cast %26 : vector<8x16x4xf32> to vector<128x4xf32>
    %28 = arith.truncf %27 : vector<128x4xf32> to vector<128x4xbf16>
    %c1_32 = arith.constant 1 : index
    %c0_33 = arith.constant 0 : index
    %c0_34 = arith.constant 0 : index
    %c0_35 = arith.constant 0 : index
    %29 = vector.load %arg3[%c1_32, %c0_33, %c0_34, %c0_35] : memref<3x3x4x128xbf16, #tpu.memory_space<vmem>>, vector<1x1x4x128xbf16>
    %30 = vector.shape_cast %29 : vector<1x1x4x128xbf16> to vector<4x128xbf16>
    %cst_36 = arith.constant dense<0.000000e+00> : vector<128x128xf32>
    %31 = tpu.matmul %28, %30, %cst_36 {dimension_numbers = #tpu.dot_dimension_numbers<[1], [0], [0], [1], [0, 0, 1, 1], [], []>} : vector<128x4xbf16>, vector<4x128xbf16>, vector<128x128xf32> -> vector<128x128xf32>
    %32 = arith.addf %24, %31 : vector<128x128xf32>
    %c0_37 = arith.constant 0 : index
    %c0_38 = arith.constant 0 : index
    %c1_39 = arith.constant 1 : index
    %c1_40 = arith.constant 1 : index
    %c0_41 = arith.constant 0 : index
    %33 = vector.load %arg2[%c0_37, %c0_38, %c1_39, %c1_40, %c0_41] : memref<1x1x10x18x4xf32, #tpu.memory_space<vmem>>, vector<1x1x8x16x4xf32>
    %34 = vector.shape_cast %33 : vector<1x1x8x16x4xf32> to vector<8x16x4xf32>
    %35 = vector.shape_cast %34 : vector<8x16x4xf32> to vector<128x4xf32>
    %36 = arith.truncf %35 : vector<128x4xf32> to vector<128x4xbf16>
    %c1_42 = arith.constant 1 : index
    %c1_43 = arith.constant 1 : index
    %c0_44 = arith.constant 0 : index
    %c0_45 = arith.constant 0 : index
    %37 = vector.load %arg3[%c1_42, %c1_43, %c0_44, %c0_45] : memref<3x3x4x128xbf16, #tpu.memory_space<vmem>>, vector<1x1x4x128xbf16>
    %38 = vector.shape_cast %37 : vector<1x1x4x128xbf16> to vector<4x128xbf16>
    %cst_46 = arith.constant dense<0.000000e+00> : vector<128x128xf32>
    %39 = tpu.matmul %36, %38, %cst_46 {dimension_numbers = #tpu.dot_dimension_numbers<[1], [0], [0], [1], [0, 0, 1, 1], [], []>} : vector<128x4xbf16>, vector<4x128xbf16>, vector<128x128xf32> -> vector<128x128xf32>
    %40 = arith.addf %32, %39 : vector<128x128xf32>
    %c0_47 = arith.constant 0 : index
    %c0_48 = arith.constant 0 : index
    %c1_49 = arith.constant 1 : index
    %c2_50 = arith.constant 2 : index
    %c0_51 = arith.constant 0 : index
    %41 = vector.load %arg2[%c0_47, %c0_48, %c1_49, %c2_50, %c0_51] : memref<1x1x10x18x4xf32, #tpu.memory_space<vmem>>, vector<1x1x8x16x4xf32>
    %42 = vector.shape_cast %41 : vector<1x1x8x16x4xf32> to vector<8x16x4xf32>
    %43 = vector.shape_cast %42 : vector<8x16x4xf32> to vector<128x4xf32>
    %44 = arith.truncf %43 : vector<128x4xf32> to vector<128x4xbf16>
    %c1_52 = arith.constant 1 : index
    %c2_53 = arith.constant 2 : index
    %c0_54 = arith.constant 0 : index
    %c0_55 = arith.constant 0 : index
    %45 = vector.load %arg3[%c1_52, %c2_53, %c0_54, %c0_55] : memref<3x3x4x128xbf16, #tpu.memory_space<vmem>>, vector<1x1x4x128xbf16>
    %46 = vector.shape_cast %45 : vector<1x1x4x128xbf16> to vector<4x128xbf16>
    %cst_56 = arith.constant dense<0.000000e+00> : vector<128x128xf32>
    %47 = tpu.matmul %44, %46, %cst_56 {dimension_numbers = #tpu.dot_dimension_numbers<[1], [0], [0], [1], [0, 0, 1, 1], [], []>} : vector<128x4xbf16>, vector<4x128xbf16>, vector<128x128xf32> -> vector<128x128xf32>
    %48 = arith.addf %40, %47 : vector<128x128xf32>
    %c0_57 = arith.constant 0 : index
    %c0_58 = arith.constant 0 : index
    %c2_59 = arith.constant 2 : index
    %c0_60 = arith.constant 0 : index
    %c0_61 = arith.constant 0 : index
    %49 = vector.load %arg2[%c0_57, %c0_58, %c2_59, %c0_60, %c0_61] : memref<1x1x10x18x4xf32, #tpu.memory_space<vmem>>, vector<1x1x8x16x4xf32>
    %50 = vector.shape_cast %49 : vector<1x1x8x16x4xf32> to vector<8x16x4xf32>
    %51 = vector.shape_cast %50 : vector<8x16x4xf32> to vector<128x4xf32>
    %52 = arith.truncf %51 : vector<128x4xf32> to vector<128x4xbf16>
    %c2_62 = arith.constant 2 : index
    %c0_63 = arith.constant 0 : index
    %c0_64 = arith.constant 0 : index
    %c0_65 = arith.constant 0 : index
    %53 = vector.load %arg3[%c2_62, %c0_63, %c0_64, %c0_65] : memref<3x3x4x128xbf16, #tpu.memory_space<vmem>>, vector<1x1x4x128xbf16>
    %54 = vector.shape_cast %53 : vector<1x1x4x128xbf16> to vector<4x128xbf16>
    %cst_66 = arith.constant dense<0.000000e+00> : vector<128x128xf32>
    %55 = tpu.matmul %52, %54, %cst_66 {dimension_numbers = #tpu.dot_dimension_numbers<[1], [0], [0], [1], [0, 0, 1, 1], [], []>} : vector<128x4xbf16>, vector<4x128xbf16>, vector<128x128xf32> -> vector<128x128xf32>
    %56 = arith.addf %48, %55 : vector<128x128xf32>
    %c0_67 = arith.constant 0 : index
    %c0_68 = arith.constant 0 : index
    %c2_69 = arith.constant 2 : index
    %c1_70 = arith.constant 1 : index
    %c0_71 = arith.constant 0 : index
    %57 = vector.load %arg2[%c0_67, %c0_68, %c2_69, %c1_70, %c0_71] : memref<1x1x10x18x4xf32, #tpu.memory_space<vmem>>, vector<1x1x8x16x4xf32>
    %58 = vector.shape_cast %57 : vector<1x1x8x16x4xf32> to vector<8x16x4xf32>
    %59 = vector.shape_cast %58 : vector<8x16x4xf32> to vector<128x4xf32>
    %60 = arith.truncf %59 : vector<128x4xf32> to vector<128x4xbf16>
    %c2_72 = arith.constant 2 : index
    %c1_73 = arith.constant 1 : index
    %c0_74 = arith.constant 0 : index
    %c0_75 = arith.constant 0 : index
    %61 = vector.load %arg3[%c2_72, %c1_73, %c0_74, %c0_75] : memref<3x3x4x128xbf16, #tpu.memory_space<vmem>>, vector<1x1x4x128xbf16>
    %62 = vector.shape_cast %61 : vector<1x1x4x128xbf16> to vector<4x128xbf16>
    %cst_76 = arith.constant dense<0.000000e+00> : vector<128x128xf32>
    %63 = tpu.matmul %60, %62, %cst_76 {dimension_numbers = #tpu.dot_dimension_numbers<[1], [0], [0], [1], [0, 0, 1, 1], [], []>} : vector<128x4xbf16>, vector<4x128xbf16>, vector<128x128xf32> -> vector<128x128xf32>
    %64 = arith.addf %56, %63 : vector<128x128xf32>
    %c0_77 = arith.constant 0 : index
    %c0_78 = arith.constant 0 : index
    %c2_79 = arith.constant 2 : index
    %c2_80 = arith.constant 2 : index
    %c0_81 = arith.constant 0 : index
    %65 = vector.load %arg2[%c0_77, %c0_78, %c2_79, %c2_80, %c0_81] : memref<1x1x10x18x4xf32, #tpu.memory_space<vmem>>, vector<1x1x8x16x4xf32>
    %66 = vector.shape_cast %65 : vector<1x1x8x16x4xf32> to vector<8x16x4xf32>
    %67 = vector.shape_cast %66 : vector<8x16x4xf32> to vector<128x4xf32>
    %68 = arith.truncf %67 : vector<128x4xf32> to vector<128x4xbf16>
    %c2_82 = arith.constant 2 : index
    %c2_83 = arith.constant 2 : index
    %c0_84 = arith.constant 0 : index
    %c0_85 = arith.constant 0 : index
    %69 = vector.load %arg3[%c2_82, %c2_83, %c0_84, %c0_85] : memref<3x3x4x128xbf16, #tpu.memory_space<vmem>>, vector<1x1x4x128xbf16>
    %70 = vector.shape_cast %69 : vector<1x1x4x128xbf16> to vector<4x128xbf16>
    %cst_86 = arith.constant dense<0.000000e+00> : vector<128x128xf32>
    %71 = tpu.matmul %68, %70, %cst_86 {dimension_numbers = #tpu.dot_dimension_numbers<[1], [0], [0], [1], [0, 0, 1, 1], [], []>} : vector<128x4xbf16>, vector<4x128xbf16>, vector<128x128xf32> -> vector<128x128xf32>
    %72 = arith.addf %64, %71 : vector<128x128xf32>
    %cst_87 = arith.constant dense<0.000000e+00> : vector<128xf32>
    %73 = vector.multi_reduction <add>, %72, %cst_87 [0] : vector<128x128xf32> to vector<128xf32>
    %74 = vector.shape_cast %73 : vector<128xf32> to vector<1x128xf32>
    %75 = arith.mulf %72, %72 : vector<128x128xf32>
    %cst_88 = arith.constant dense<0.000000e+00> : vector<128xf32>
    %76 = vector.multi_reduction <add>, %75, %cst_88 [0] : vector<128x128xf32> to vector<128xf32>
    %77 = vector.shape_cast %76 : vector<128xf32> to vector<1x128xf32>
    %78 = tpu.concatenate %74, %77 in 0 : vector<1x128xf32>, vector<1x128xf32> -> vector<2x128xf32>
    %c0_89 = arith.constant 0 : index
    %c0_90 = arith.constant 0 : index
    %c0_91 = arith.constant 0 : index
    %c0_92 = arith.constant 0 : index
    %79 = vector.load %arg4[%c0_89, %c0_90, %c0_91, %c0_92] : memref<1x1x2x128xf32, #tpu.memory_space<vmem>>, vector<1x1x2x128xf32>
    %80 = vector.shape_cast %79 : vector<1x1x2x128xf32> to vector<2x128xf32>
    %81 = vector.shape_cast %78 : vector<2x128xf32> to vector<1x1x2x128xf32>
    tpu.vector_store %arg4[%c0_89, %c0_90, %c0_91, %c0_92], %81 {strides = array<i32>} : memref<1x1x2x128xf32, #tpu.memory_space<vmem>>, vector<1x1x2x128xf32>,
    return
  }
  func.func @transform_0(%arg0: i32, %arg1: i32) -> (i32, i32, i32, i32, i32) {
    %c0_i32 = arith.constant 0 : i32
    %c0_i32_0 = arith.constant 0 : i32
    %c0_i32_1 = arith.constant 0 : i32
    %c0_i32_2 = arith.constant 0 : i32
    return %arg0, %arg1, %c0_i32, %c0_i32_0, %c0_i32_1 : i32, i32, i32, i32, i32
  }
  func.func @transform_1(%arg0: i32, %arg1: i32) -> (i32, i32, i32, i32) {
    %c0_i32 = arith.constant 0 : i32
    %c0_i32_0 = arith.constant 0 : i32
    %c0_i32_1 = arith.constant 0 : i32
    %c0_i32_2 = arith.constant 0 : i32
    %c0_i32_3 = arith.constant 0 : i32
    return %c0_i32, %c0_i32_0, %c0_i32_1, %c0_i32_2 : i32, i32, i32, i32
  }
  func.func @transform_2(%arg0: i32, %arg1: i32) -> (i32, i32, i32, i32) {
    %c0_i32 = arith.constant 0 : i32
    %c0_i32_0 = arith.constant 0 : i32
    %c0_i32_1 = arith.constant 0 : i32
    return %arg0, %arg1, %c0_i32, %c0_i32_0 : i32, i32, i32, i32
  }
}

</mosaic_0001>

<llo_original>
// kernel: tpu_custom_call.1
$region0: #{tpu_custom_call.1}
  #allocation0 [shape = 'u32[]', space=smem, size = 0x4, offset = 0x4, fixed_abs, tag = 'smem constant byte address 0x4 - core index']
  #allocation1 [shape = 'u32[144,128]{1,0:T(1,128)}', space=vmem, size = 0x12000, scoped, tag = 'internal scratch']
  %s0 = inlined_call_operand.vmem [shape: f32[2,2,10,18,4], index: 0, kind: input, shape index: {}]
  %s1 = inlined_call_operand.vmem [shape: bf16[3,3,4,128], index: 1, kind: input, shape index: {}]
  %s2 = inlined_call_operand.hbm [shape: f32[2,2,2,128], index: 2, kind: output, shape index: {}]
  %s3 = sld [smem:[#allocation0]]
  $region41: #{tpu_custom_call.1} parent=0
    _
  %s5 = ssub.s32 1, %s3
  %s6 = scalar_select 0, %s5, %s3
  $region1: #{tpu_custom_call.1} parent=0
    #allocation2 [shape = 'u8[2048]{0}', space=vmem, size = 0x800, scoped, tag = 'output window, operand 0']
    #allocation3 [shape = 's32[2]{0}', space=sflag, size = 0x8, scoped, tag = 'scoped memory for tpu_custom_call.1']
    %7 = vsyncpa [#allocation3], 0
    %s8 = scalar_lea.sflag [#allocation3], 1
    %9 = vsyncpa %s8, 0
    loop: start=0, step=1, limit=6
    $region2: #{tpu_custom_call.1} parent=1 // loop_pre_header
      _
    $region3: #{tpu_custom_call.1} parent=1 // loop_header
      %s11 = sphi 0, %s15
      %p12 = scmp.ge.s32.totalorder %s11, 6
      %s18 = sphi 0, %s30
      %s19 = sphi 0, %s26
      %s20 = sphi 0, %s18
      %s21 = sphi 0, %s19
      %s22 = sphi 0, %s20
      %s23 = sphi 0, %s21
      %s35 = sphi 0, %s37
      %s38 = sphi 0, %s35
      %s39 = sphi 0, %s38
      %s55 = sphi 0, %s39
      %s59 = sphi 0, %s59
      %s61 = sphi 0, %s59
      %s62 = sphi 0, %s61
      %s76 = sphi 0, %s62
      %s84 = sphi 0, %s86
      %s87 = sphi 0, %s84
      %s88 = sphi 0, %s87
      %s104 = sphi 0, %s88
    $region4: #{tpu_custom_call.1} parent=1 // loop_header_branch
      %14 = sbr.rel (%p12) target = $region8
    $region5: #{tpu_custom_call.1} parent=1 // loop_body
      %s16 = ssub.s32 %s11, 1
      %s17 = ssub.s32 %s11, 2
      %s24 = sadd.s32 1, %s19
      %p25 = scmp.ge.s32.totalorder %s24, 2
      %s26 = scalar_select %p25, 0, %s24
      %s27 = sadd.s32 1, %s18
      %s28 = scalar_select %p25, %s27, %s18
      %p29 = scmp.ge.s32.totalorder %s28, 2
      %s30 = scalar_select %p29, 0, %s28
      %s31 = ssub.s32 %s18, %s30
      %s32 = ssub.s32 %s19, %s26
      %s33 = sor.u32 %s31, %s32
      %p34 = scmp.eq.s32.totalorder %s33, 0
      %s36 = sadd.s32 %s35, 1
      %s37 = scalar_select %p34, %s35, %s36
      %p40 = pneg %p34
      %p41 = scmp.eq.s32.totalorder %s11, 3
      %p42 = por %p40, %p41
      %p43 = scmp.ne.s32.totalorder %s35, %s38
      %p44 = scmp.eq.s32.totalorder %s11, 0
      %p45 = por %p43, %p44
      %p46 = scmp.ne.s32.totalorder %s35, %s38
      %p47 = scmp.eq.s32.totalorder %s16, 3
      %p48 = por %p46, %p47
      %p49 = scmp.ne.s32.totalorder %s38, %s39
      %p50 = scmp.eq.s32.totalorder %s16, 0
      %p51 = por %p49, %p50
      %p52 = scmp.ne.s32.totalorder %s38, %s39
      %p53 = scmp.eq.s32.totalorder %s17, 3
      %p54 = por %p52, %p53
      %p56 = scmp.ne.s32.totalorder %s39, %s55
      %p57 = scmp.eq.s32.totalorder %s17, 0
      %p58 = por %p56, %p57
      %s60 = sadd.s32 %s59, 1
      %p63 = scmp.eq.s32.totalorder %s11, 3
      %p64 = scmp.ne.s32.totalorder %s59, %s61
      %p65 = scmp.eq.s32.totalorder %s11, 0
      %p66 = por %p64, %p65
      %p67 = scmp.ne.s32.totalorder %s59, %s61
      %p68 = scmp.eq.s32.totalorder %s16, 3
      %p69 = por %p67, %p68
      %p70 = scmp.ne.s32.totalorder %s61, %s62
      %p71 = scmp.eq.s32.totalorder %s16, 0
      %p72 = por %p70, %p71
      %p73 = scmp.ne.s32.totalorder %s61, %s62
      %p74 = scmp.eq.s32.totalorder %s17, 3
      %p75 = por %p73, %p74
      %p77 = scmp.ne.s32.totalorder %s62, %s76
      %p78 = scmp.eq.s32.totalorder %s17, 0
      %p79 = por %p77, %p78
      %s80 = ssub.s32 %s18, %s30
      %s81 = ssub.s32 %s19, %s26
      %s82 = sor.u32 %s80, %s81
      %p83 = scmp.eq.s32.totalorder %s82, 0
      %s85 = sadd.s32 %s84, 1
      %s86 = scalar_select %p83, %s84, %s85
      %p89 = pneg %p83
      %p90 = scmp.eq.s32.totalorder %s11, 3
      %p91 = por %p89, %p90
      %p92 = scmp.ne.s32.totalorder %s84, %s87
      %p93 = scmp.eq.s32.totalorder %s11, 0
      %p94 = por %p92, %p93
      %p95 = scmp.ne.s32.totalorder %s84, %s87
      %p96 = scmp.eq.s32.totalorder %s16, 3
      %p97 = por %p95, %p96
      %p98 = scmp.ne.s32.totalorder %s87, %s88
      %p99 = scmp.eq.s32.totalorder %s16, 0
      %p100 = por %p98, %p99
      %p101 = scmp.ne.s32.totalorder %s87, %s88
      %p102 = scmp.eq.s32.totalorder %s17, 3
      %p103 = por %p101, %p102
      %p105 = scmp.ne.s32.totalorder %s88, %s104
      %p106 = scmp.eq.s32.totalorder %s17, 0
      %p107 = por %p105, %p106
      %p108 = scmp.le.s32.totalorder 1, %s11
      %p109 = scmp.lt.s32.totalorder %s11, 5
      %p110 = pnand %p108, %p109
      %p111 = pneg %p110
      // Predicated region
      $region9: #{tpu_custom_call.1} parent=5 // pred_check
        _
      $region10: #{tpu_custom_call.1} parent=5 // pred_check_branch
        %113 = sbr.rel (%p110) target = $region12
      $region11: #{tpu_custom_call.1} parent=5 // pred_region
        %s114 = ssub.s32 %s11, 1
        // Predicated region
        $region13: #{tpu_custom_call.1} parent=11 // pred_check
          %p115 = pneg %p72
        $region14: #{tpu_custom_call.1} parent=11 // pred_check_branch
          %117 = sbr.rel (%p115) target = $region16
        $region15: #{tpu_custom_call.1} parent=11 // pred_region
          _
        $region16: #{tpu_custom_call.1} parent=11 // pred_fallthru
          _
      $region12: #{tpu_custom_call.1} parent=5 // pred_fallthru
        _
      %p118 = scmp.lt.s32.totalorder %s11, 4
      // Predicated region
      $region17: #{tpu_custom_call.1} parent=5 // pred_check
        %p119 = pneg %p118
      $region18: #{tpu_custom_call.1} parent=5 // pred_check_branch
        %121 = sbr.rel (%p119) target = $region20
      $region19: #{tpu_custom_call.1} parent=5 // pred_region
        // Predicated region
        $region21: #{tpu_custom_call.1} parent=19 // pred_check
          %p122 = pneg %p45
        $region22: #{tpu_custom_call.1} parent=19 // pred_check_branch
          %124 = sbr.rel (%p122) target = $region24
        $region23: #{tpu_custom_call.1} parent=19 // pred_region
          %p125 = scmp.lt.s32.totalorder %s18, 1
          %s126 = scalar_select %p125, %s18, 1
          %p127 = scmp.lt.s32.totalorder %s19, 1
          %s128 = scalar_select %p127, %s19, 1
          %s129 = smul.addr %s128, 30
          %s130 = smul.addr %s126, 60
          %s131 = sadd.s32 %s129, %s130
          %s132 = smul.addr %s131, 8
          %s133 = scalar_lea.vmem %s0, %s132
        $region24: #{tpu_custom_call.1} parent=19 // pred_fallthru
          _
      $region20: #{tpu_custom_call.1} parent=5 // pred_fallthru
        _
      %p134 = scmp.le.s32.totalorder 1, %s11
      %p135 = scmp.lt.s32.totalorder %s11, 5
      %p136 = pnand %p134, %p135
      %p137 = pneg %p136
      // Predicated region
      $region25: #{tpu_custom_call.1} parent=5 // pred_check
        _
      $region26: #{tpu_custom_call.1} parent=5 // pred_check_branch
        %139 = sbr.rel (%p136) target = $region28
      $region27: #{tpu_custom_call.1} parent=5 // pred_region
        %s140 = ssub.s32 %s11, 1
        %p141 = scmp.lt.s32.totalorder %s20, 1
        %s142 = scalar_select %p141, %s20, 1
        %p143 = scmp.lt.s32.totalorder %s21, 1
        %s144 = scalar_select %p143, %s21, 1
        %s145 = smul.addr %s144, 30
        %s146 = smul.addr %s142, 60
        %s147 = sadd.s32 %s145, %s146
        %s148 = smul.addr %s147, 8
        %s149 = scalar_lea.vmem %s0, %s148
        %p150 = pneg %p51
        %p151 = pneg %p48
        %p152 = pneg %p72
        %p153 = pneg %p69
        %p154 = pneg %p100
        %p155 = pneg %p97
        %s156 = sand.u32 %s87, 1
        %s157 = scalar_lea.sflag [#allocation3], %s156
        %s158 = sand.u32 %s87, 1
        %s159 = smul.addr %s158, 2
        %s160 = scalar_lea.vmem [#allocation2], %s159
        %p161 = scmp.lt.s32.totalorder %s20, 1
        %s162 = scalar_select %p161, %s20, 1
        %p163 = scmp.lt.s32.totalorder %s21, 1
        %s164 = scalar_select %p163, %s21, 1
        %s165 = smul.addr %s164, 30
        %s166 = smul.addr %s162, 60
        %s167 = sadd.s32 %s165, %s166
        %s168 = smul.addr %s167, 8
        %s169 = scalar_lea.vmem %s0, %s168
        %v171 = vld [vmem:[%s169] sm:$0xff]
        %v172 = vld [vmem:[%s169 + $0x8] sm:$0xff]
        %v173 = vld [vmem:[%s169 + $0x18] sm:$0xff]
        %v174 = vld [vmem:[%s169 + $0x20] sm:$0xff]
        %v175 = vld [vmem:[%s169 + $0x30] sm:$0xff]
        %v176 = vld [vmem:[%s169 + $0x38] sm:$0xff]
        %v177 = vld [vmem:[%s169 + $0x48] sm:$0xff]
        %v178 = vld [vmem:[%s169 + $0x50] sm:$0xff]
        %v179 = vld [vmem:[%s169 + $0x60] sm:$0xff]
        %v180 = vld [vmem:[%s169 + $0x68] sm:$0xff]
        %v181 = vld [vmem:[%s169 + $0x78] sm:$0xff]
        %v182 = vld [vmem:[%s169 + $0x80] sm:$0xff]
        %v183 = vld [vmem:[%s169 + $0x90] sm:$0xff]
        %v184 = vld [vmem:[%s169 + $0x98] sm:$0xff]
        %v185 = vld [vmem:[%s169 + $0xa8] sm:$0xff]
        %v186 = vld [vmem:[%s169 + $0xb0] sm:$0xff]
        %v187 = vpack.c.bf16 %v172, %v171
        %v188 = vpack.c.bf16 %v174, %v173
        %v189 = vpack.c.bf16 %v176, %v175
        %v190 = vpack.c.bf16 %v178, %v177
        %v191 = vpack.c.bf16 %v180, %v179
        %v192 = vpack.c.bf16 %v182, %v181
        %v193 = vpack.c.bf16 %v184, %v183
        %v194 = vpack.c.bf16 %v186, %v185
        %v195 = vld [vmem:[%s1] sm:$0x3]
        %v196 = vld [vmem:[%s169 + $0x1] sm:$0xff]
        %v197 = vld [vmem:[%s169 + $0x9] sm:$0xff]
        %v198 = vld [vmem:[%s169 + $0x19] sm:$0xff]
        %v199 = vld [vmem:[%s169 + $0x21] sm:$0xff]
        %v200 = vld [vmem:[%s169 + $0x31] sm:$0xff]
        %v201 = vld [vmem:[%s169 + $0x39] sm:$0xff]
        %v202 = vld [vmem:[%s169 + $0x49] sm:$0xff]
        %v203 = vld [vmem:[%s169 + $0x51] sm:$0xff]
        %v204 = vld [vmem:[%s169 + $0x61] sm:$0xff]
        %v205 = vld [vmem:[%s169 + $0x69] sm:$0xff]
        %v206 = vld [vmem:[%s169 + $0x79] sm:$0xff]
        %v207 = vld [vmem:[%s169 + $0x81] sm:$0xff]
        %v208 = vld [vmem:[%s169 + $0x91] sm:$0xff]
        %v209 = vld [vmem:[%s169 + $0x99] sm:$0xff]
        %v210 = vld [vmem:[%s169 + $0xa9] sm:$0xff]
        %v211 = vld [vmem:[%s169 + $0xb1] sm:$0xff]
        %v212 = vpack.c.bf16 %v197, %v196
        %v213 = vpack.c.bf16 %v199, %v198
        %v214 = vpack.c.bf16 %v201, %v200
        %v215 = vpack.c.bf16 %v203, %v202
        %v216 = vpack.c.bf16 %v205, %v204
        %v217 = vpack.c.bf16 %v207, %v206
        %v218 = vpack.c.bf16 %v209, %v208
        %v219 = vpack.c.bf16 %v211, %v210
        %s220 = scalar_lea.vmem %s1, 2
        %v221 = vld [vmem:[%s220] sm:$0x3]
        %vm222 = vcmask 31744
        %v224 = vsel %vm222, %v212, 0
        %v227 = vsel %vm222, %v213, 0
        %v230 = vsel %vm222, %v214, 0
        %v233 = vsel %vm222, %v215, 0
        %v236 = vsel %vm222, %v216, 0
        %v239 = vsel %vm222, %v217, 0
        %v242 = vsel %vm222, %v218, 0
        %v245 = vsel %vm222, %v219, 0
        %vm247 = vcmask 1041408
        %v249 = vsel %vm247, %v221, 0
        %251 = vmatprep.subr.bf16.mxu0 0
        %252 = vmatpush1.bf16.msra.mxu0 %v249
        %253 = vmatprep.subr.bf16.mxu0 0
        %254 = vmatpush1.bf16.msra.mxu0 0
        %255 = vmatprep.subr.bf16.mxu0 0
        %256 = vmatpush1.bf16.msra.mxu0 0
        %257 = vmatprep.subr.bf16.mxu0 0
        %258 = vmatpush1.bf16.msra.mxu0 0
        %259 = vmatprep.subr.bf16.mxu0 0
        %260 = vmatpush1.bf16.msra.mxu0 0
        %261 = vmatprep.subr.bf16.mxu0 0
        %262 = vmatpush1.bf16.msra.mxu0 0
        %263 = vmatprep.subr.bf16.mxu0 0
        %264 = vmatpush1.bf16.msra.mxu0 0
        %265 = vmatprep.subr.bf16.mxu0 0
        %266 = vmatpush1.bf16.msra.mxu0 0
        %267 = vmatprep.subr.bf16.mxu0 0
        %268 = vmatpush1.bf16.msra.mxu0 0
        %269 = vmatprep.subr.bf16.mxu0 0
        %270 = vmatpush1.bf16.msra.mxu0 0
        %271 = vmatprep.subr.bf16.mxu0 0
        %272 = vmatpush1.bf16.msra.mxu0 0
        %273 = vmatprep.subr.bf16.mxu0 0
        %274 = vmatpush1.bf16.msra.mxu0 0
        %275 = vmatprep.subr.bf16.mxu0 0
        %276 = vmatpush1.bf16.msra.mxu0 0
        %277 = vmatprep.subr.bf16.mxu0 0
        %278 = vmatpush1.bf16.msra.mxu0 0
        %279 = vmatprep.subr.bf16.mxu0 0
        %280 = vmatpush1.bf16.msra.mxu0 0
        %281 = vmatprep.subr.bf16.mxu0 0
        %282 = vmatpush1.bf16.msra.mxu0 0
        %283 = vmatprep.mubr.bf16.mxu0 0
        %284 = vmatmul.mubr.bf16.gmra.mrb[0].mxu0 %v224
        %v285 = vpop.f32.mrb[0].mxu0
        %v286 = vadd.f32 0.0, %v285
        %v287 = vpop.f32.mrb[0].mxu0
        %v288 = vpop.f32.mrb[0].mxu0
        %v289 = vadd.f32 0.0, %v288
        %v290 = vpop.f32.mrb[0].mxu0
        %291 = vmatprep.mubr.bf16.mxu0 0
        %292 = vmatmul.mubr.bf16.gmra.mrb[0].mxu0 %v227
        %v293 = vpop.f32.mrb[0].mxu0
        %v294 = vadd.f32 0.0, %v293
        %v295 = vpop.f32.mrb[0].mxu0
        %v296 = vpop.f32.mrb[0].mxu0
        %v297 = vadd.f32 0.0, %v296
        %v298 = vpop.f32.mrb[0].mxu0
        %299 = vmatprep.mubr.bf16.mxu0 0
        %300 = vmatmul.mubr.bf16.gmra.mrb[0].mxu0 %v230
        %v301 = vpop.f32.mrb[0].mxu0
        %v302 = vadd.f32 0.0, %v301
        %v303 = vpop.f32.mrb[0].mxu0
        %v304 = vpop.f32.mrb[0].mxu0
        %v305 = vadd.f32 0.0, %v304
        %v306 = vpop.f32.mrb[0].mxu0
        %307 = vmatprep.mubr.bf16.mxu0 0
        %308 = vmatmul.mubr.bf16.gmra.mrb[0].mxu0 %v233
        %v309 = vpop.f32.mrb[0].mxu0
        %v310 = vadd.f32 0.0, %v309
        %v311 = vpop.f32.mrb[0].mxu0
        %v312 = vpop.f32.mrb[0].mxu0
        %v313 = vadd.f32 0.0, %v312
        %v314 = vpop.f32.mrb[0].mxu0
        %315 = vmatprep.mubr.bf16.mxu0 0
        %316 = vmatmul.mubr.bf16.gmra.mrb[0].mxu0 %v236
        %v317 = vpop.f32.mrb[0].mxu0
        %v318 = vadd.f32 0.0, %v317
        %v319 = vpop.f32.mrb[0].mxu0
        %v320 = vpop.f32.mrb[0].mxu0
        %v321 = vadd.f32 0.0, %v320
        %v322 = vpop.f32.mrb[0].mxu0
        %323 = vmatprep.mubr.bf16.mxu0 0
        %324 = vmatmul.mubr.bf16.gmra.mrb[0].mxu0 %v239
        %v325 = vpop.f32.mrb[0].mxu0
        %v326 = vadd.f32 0.0, %v325
        %v327 = vpop.f32.mrb[0].mxu0
        %v328 = vpop.f32.mrb[0].mxu0
        %v329 = vadd.f32 0.0, %v328
        %v330 = vpop.f32.mrb[0].mxu0
        %331 = vmatprep.mubr.bf16.mxu0 0
        %332 = vmatmul.mubr.bf16.gmra.mrb[0].mxu0 %v242
        %v333 = vpop.f32.mrb[0].mxu0
        %v334 = vadd.f32 0.0, %v333
        %v335 = vpop.f32.mrb[0].mxu0
        %v336 = vpop.f32.mrb[0].mxu0
        %v337 = vadd.f32 0.0, %v336
        %v338 = vpop.f32.mrb[0].mxu0
        %339 = vmatprep.mubr.bf16.mxu0 0
        %340 = vmatmul.mubr.bf16.gmra.mrb[0].mxu0 %v245
        %v341 = vpop.f32.mrb[0].mxu0
        %v342 = vadd.f32 0.0, %v341
        %v343 = vpop.f32.mrb[0].mxu0
        %v344 = vpop.f32.mrb[0].mxu0
        %v345 = vadd.f32 0.0, %v344
        %v346 = vpop.f32.mrb[0].mxu0
        %347 = vdwg.mxu0
        %v349 = vsel %vm222, %v187, 0
        %v352 = vsel %vm222, %v188, 0
        %v355 = vsel %vm222, %v189, 0
        %v358 = vsel %vm222, %v190, 0
        %v361 = vsel %vm222, %v191, 0
        %v364 = vsel %vm222, %v192, 0
        %v367 = vsel %vm222, %v193, 0
        %v370 = vsel %vm222, %v194, 0
        %v373 = vsel %vm247, %v195, 0
        %375 = vmatprep.subr.bf16.mxu0 0
        %376 = vmatpush1.bf16.msra.mxu0 %v373
        %377 = vmatprep.subr.bf16.mxu0 0
        %378 = vmatpush1.bf16.msra.mxu0 0
        %379 = vmatprep.subr.bf16.mxu0 0
        %380 = vmatpush1.bf16.msra.mxu0 0
        %381 = vmatprep.subr.bf16.mxu0 0
        %382 = vmatpush1.bf16.msra.mxu0 0
        %383 = vmatprep.subr.bf16.mxu0 0
        %384 = vmatpush1.bf16.msra.mxu0 0
        %385 = vmatprep.subr.bf16.mxu0 0
        %386 = vmatpush1.bf16.msra.mxu0 0
        %387 = vmatprep.subr.bf16.mxu0 0
        %388 = vmatpush1.bf16.msra.mxu0 0
        %389 = vmatprep.subr.bf16.mxu0 0
        %390 = vmatpush1.bf16.msra.mxu0 0
        %391 = vmatprep.subr.bf16.mxu0 0
        %392 = vmatpush1.bf16.msra.mxu0 0
        %393 = vmatprep.subr.bf16.mxu0 0
        %394 = vmatpush1.bf16.msra.mxu0 0
        %395 = vmatprep.subr.bf16.mxu0 0
        %396 = vmatpush1.bf16.msra.mxu0 0
        %397 = vmatprep.subr.bf16.mxu0 0
        %398 = vmatpush1.bf16.msra.mxu0 0
        %399 = vmatprep.subr.bf16.mxu0 0
        %400 = vmatpush1.bf16.msra.mxu0 0
        %401 = vmatprep.subr.bf16.mxu0 0
        %402 = vmatpush1.bf16.msra.mxu0 0
        %403 = vmatprep.subr.bf16.mxu0 0
        %404 = vmatpush1.bf16.msra.mxu0 0
        %405 = vmatprep.subr.bf16.mxu0 0
        %406 = vmatpush1.bf16.msra.mxu0 0
        %407 = vmatprep.mubr.bf16.mxu0 0
        %408 = vmatmul.mubr.bf16.gmra.mrb[0].mxu0 %v349
        %v409 = vpop.f32.mrb[0].mxu0
        %v410 = vadd.f32 %v286, %v409
        %v411 = vpop.f32.mrb[0].mxu0
        %v412 = vpop.f32.mrb[0].mxu0
        %v413 = vadd.f32 %v289, %v412
        %v414 = vpop.f32.mrb[0].mxu0
        %415 = vmatprep.mubr.bf16.mxu0 0
        %416 = vmatmul.mubr.bf16.gmra.mrb[0].mxu0 %v352
        %v417 = vpop.f32.mrb[0].mxu0
        %v418 = vadd.f32 %v294, %v417
        %v419 = vpop.f32.mrb[0].mxu0
        %v420 = vpop.f32.mrb[0].mxu0
        %v421 = vadd.f32 %v297, %v420
        %v422 = vpop.f32.mrb[0].mxu0
        %423 = vmatprep.mubr.bf16.mxu0 0
        %424 = vmatmul.mubr.bf16.gmra.mrb[0].mxu0 %v355
        %v425 = vpop.f32.mrb[0].mxu0
        %v426 = vadd.f32 %v302, %v425
        %v427 = vpop.f32.mrb[0].mxu0
        %v428 = vpop.f32.mrb[0].mxu0
        %v429 = vadd.f32 %v305, %v428
        %v430 = vpop.f32.mrb[0].mxu0
        %431 = vmatprep.mubr.bf16.mxu0 0
        %432 = vmatmul.mubr.bf16.gmra.mrb[0].mxu0 %v358
        %v433 = vpop.f32.mrb[0].mxu0
        %v434 = vadd.f32 %v310, %v433
        %v435 = vpop.f32.mrb[0].mxu0
        %v436 = vpop.f32.mrb[0].mxu0
        %v437 = vadd.f32 %v313, %v436
        %v438 = vpop.f32.mrb[0].mxu0
        %439 = vmatprep.mubr.bf16.mxu0 0
        %440 = vmatmul.mubr.bf16.gmra.mrb[0].mxu0 %v361
        %v441 = vpop.f32.mrb[0].mxu0
        %v442 = vadd.f32 %v318, %v441
        %v443 = vpop.f32.mrb[0].mxu0
        %v444 = vpop.f32.mrb[0].mxu0
        %v445 = vadd.f32 %v321, %v444
        %v446 = vpop.f32.mrb[0].mxu0
        %447 = vmatprep.mubr.bf16.mxu0 0
        %448 = vmatmul.mubr.bf16.gmra.mrb[0].mxu0 %v364
        %v449 = vpop.f32.mrb[0].mxu0
        %v450 = vadd.f32 %v326, %v449
        %v451 = vpop.f32.mrb[0].mxu0
        %v452 = vpop.f32.mrb[0].mxu0
        %v453 = vadd.f32 %v329, %v452
        %v454 = vpop.f32.mrb[0].mxu0
        %455 = vmatprep.mubr.bf16.mxu0 0
        %456 = vmatmul.mubr.bf16.gmra.mrb[0].mxu0 %v367
        %v457 = vpop.f32.mrb[0].mxu0
        %v458 = vadd.f32 %v334, %v457
        %v459 = vpop.f32.mrb[0].mxu0
        %v460 = vpop.f32.mrb[0].mxu0
        %v461 = vadd.f32 %v337, %v460
        %v462 = vpop.f32.mrb[0].mxu0
        %463 = vmatprep.mubr.bf16.mxu0 0
        %464 = vmatmul.mubr.bf16.gmra.mrb[0].mxu0 %v370
        %v465 = vpop.f32.mrb[0].mxu0
        %v466 = vadd.f32 %v342, %v465
        %v467 = vpop.f32.mrb[0].mxu0
        %v468 = vpop.f32.mrb[0].mxu0
        %v469 = vadd.f32 %v345, %v468
        %v470 = vpop.f32.mrb[0].mxu0
        %471 = vdwg.mxu0
        %v472 = vld [vmem:[%s169 + $0x2] sm:$0xff]
        %v473 = vld [vmem:[%s169 + $0xa] sm:$0xff]
        %v474 = vld [vmem:[%s169 + $0x1a] sm:$0xff]
        %v475 = vld [vmem:[%s169 + $0x22] sm:$0xff]
        %v476 = vld [vmem:[%s169 + $0x32] sm:$0xff]
        %v477 = vld [vmem:[%s169 + $0x3a] sm:$0xff]
        %v478 = vld [vmem:[%s169 + $0x4a] sm:$0xff]
        %v479 = vld [vmem:[%s169 + $0x52] sm:$0xff]
        %v480 = vld [vmem:[%s169 + $0x62] sm:$0xff]
        %v481 = vld [vmem:[%s169 + $0x6a] sm:$0xff]
        %v482 = vld [vmem:[%s169 + $0x7a] sm:$0xff]
        %v483 = vld [vmem:[%s169 + $0x82] sm:$0xff]
        %v484 = vld [vmem:[%s169 + $0x92] sm:$0xff]
        %v485 = vld [vmem:[%s169 + $0x9a] sm:$0xff]
        %v486 = vld [vmem:[%s169 + $0xaa] sm:$0xff]
        %v487 = vld [vmem:[%s169 + $0xb2] sm:$0xff]
        %v488 = vpack.c.bf16 %v473, %v472
        %v489 = vpack.c.bf16 %v475, %v474
        %v490 = vpack.c.bf16 %v477, %v476
        %v491 = vpack.c.bf16 %v479, %v478
        %v492 = vpack.c.bf16 %v481, %v480
        %v493 = vpack.c.bf16 %v483, %v482
        %v494 = vpack.c.bf16 %v485, %v484
        %v495 = vpack.c.bf16 %v487, %v486
        %s496 = scalar_lea.vmem %s1, 4
        %v497 = vld [vmem:[%s496] sm:$0x3]
        %v499 = vsel %vm222, %v488, 0
        %v502 = vsel %vm222, %v489, 0
        %v505 = vsel %vm222, %v490, 0
        %v508 = vsel %vm222, %v491, 0
        %v511 = vsel %vm222, %v492, 0
        %v514 = vsel %vm222, %v493, 0
        %v517 = vsel %vm222, %v494, 0
        %v520 = vsel %vm222, %v495, 0
        %v523 = vsel %vm247, %v497, 0
        %525 = vmatprep.subr.bf16.mxu0 0
        %526 = vmatpush1.bf16.msra.mxu0 %v523
        %527 = vmatprep.subr.bf16.mxu0 0
        %528 = vmatpush1.bf16.msra.mxu0 0
        %529 = vmatprep.subr.bf16.mxu0 0
        %530 = vmatpush1.bf16.msra.mxu0 0
        %531 = vmatprep.subr.bf16.mxu0 0
        %532 = vmatpush1.bf16.msra.mxu0 0
        %533 = vmatprep.subr.bf16.mxu0 0
        %534 = vmatpush1.bf16.msra.mxu0 0
        %535 = vmatprep.subr.bf16.mxu0 0
        %536 = vmatpush1.bf16.msra.mxu0 0
        %537 = vmatprep.subr.bf16.mxu0 0
        %538 = vmatpush1.bf16.msra.mxu0 0
        %539 = vmatprep.subr.bf16.mxu0 0
        %540 = vmatpush1.bf16.msra.mxu0 0
        %541 = vmatprep.subr.bf16.mxu0 0
        %542 = vmatpush1.bf16.msra.mxu0 0
        %543 = vmatprep.subr.bf16.mxu0 0
        %544 = vmatpush1.bf16.msra.mxu0 0
        %545 = vmatprep.subr.bf16.mxu0 0
        %546 = vmatpush1.bf16.msra.mxu0 0
        %547 = vmatprep.subr.bf16.mxu0 0
        %548 = vmatpush1.bf16.msra.mxu0 0
        %549 = vmatprep.subr.bf16.mxu0 0
        %550 = vmatpush1.bf16.msra.mxu0 0
        %551 = vmatprep.subr.bf16.mxu0 0
        %552 = vmatpush1.bf16.msra.mxu0 0
        %553 = vmatprep.subr.bf16.mxu0 0
        %554 = vmatpush1.bf16.msra.mxu0 0
        %555 = vmatprep.subr.bf16.mxu0 0
        %556 = vmatpush1.bf16.msra.mxu0 0
        %557 = vmatprep.mubr.bf16.mxu0 0
        %558 = vmatmul.mubr.bf16.gmra.mrb[0].mxu0 %v499
        %v559 = vpop.f32.mrb[0].mxu0
        %v560 = vadd.f32 0.0, %v559
        %v561 = vpop.f32.mrb[0].mxu0
        %v562 = vpop.f32.mrb[0].mxu0
        %v563 = vadd.f32 0.0, %v562
        %v564 = vpop.f32.mrb[0].mxu0
        %565 = vmatprep.mubr.bf16.mxu0 0
        %566 = vmatmul.mubr.bf16.gmra.mrb[0].mxu0 %v502
        %v567 = vpop.f32.mrb[0].mxu0
        %v568 = vadd.f32 0.0, %v567
        %v569 = vpop.f32.mrb[0].mxu0
        %v570 = vpop.f32.mrb[0].mxu0
        %v571 = vadd.f32 0.0, %v570
        %v572 = vpop.f32.mrb[0].mxu0
        %573 = vmatprep.mubr.bf16.mxu0 0
        %574 = vmatmul.mubr.bf16.gmra.mrb[0].mxu0 %v505
        %v575 = vpop.f32.mrb[0].mxu0
        %v576 = vadd.f32 0.0, %v575
        %v577 = vpop.f32.mrb[0].mxu0
        %v578 = vpop.f32.mrb[0].mxu0
        %v579 = vadd.f32 0.0, %v578
        %v580 = vpop.f32.mrb[0].mxu0
        %581 = vmatprep.mubr.bf16.mxu0 0
        %582 = vmatmul.mubr.bf16.gmra.mrb[0].mxu0 %v508
        %v583 = vpop.f32.mrb[0].mxu0
        %v584 = vadd.f32 0.0, %v583
        %v585 = vpop.f32.mrb[0].mxu0
        %v586 = vpop.f32.mrb[0].mxu0
        %v587 = vadd.f32 0.0, %v586
        %v588 = vpop.f32.mrb[0].mxu0
        %589 = vmatprep.mubr.bf16.mxu0 0
        %590 = vmatmul.mubr.bf16.gmra.mrb[0].mxu0 %v511
        %v591 = vpop.f32.mrb[0].mxu0
        %v592 = vadd.f32 0.0, %v591
        %v593 = vpop.f32.mrb[0].mxu0
        %v594 = vpop.f32.mrb[0].mxu0
        %v595 = vadd.f32 0.0, %v594
        %v596 = vpop.f32.mrb[0].mxu0
        %597 = vmatprep.mubr.bf16.mxu0 0
        %598 = vmatmul.mubr.bf16.gmra.mrb[0].mxu0 %v514
        %v599 = vpop.f32.mrb[0].mxu0
        %v600 = vadd.f32 0.0, %v599
        %v601 = vpop.f32.mrb[0].mxu0
        %v602 = vpop.f32.mrb[0].mxu0
        %v603 = vadd.f32 0.0, %v602
        %v604 = vpop.f32.mrb[0].mxu0
        %605 = vmatprep.mubr.bf16.mxu0 0
        %606 = vmatmul.mubr.bf16.gmra.mrb[0].mxu0 %v517
        %v607 = vpop.f32.mrb[0].mxu0
        %v608 = vadd.f32 0.0, %v607
        %v609 = vpop.f32.mrb[0].mxu0
        %v610 = vpop.f32.mrb[0].mxu0
        %v611 = vadd.f32 0.0, %v610
        %v612 = vpop.f32.mrb[0].mxu0
        %613 = vmatprep.mubr.bf16.mxu0 0
        %614 = vmatmul.mubr.bf16.gmra.mrb[0].mxu0 %v520
        %v615 = vpop.f32.mrb[0].mxu0
        %v616 = vadd.f32 0.0, %v615
        %v617 = vpop.f32.mrb[0].mxu0
        %v618 = vpop.f32.mrb[0].mxu0
        %v619 = vadd.f32 0.0, %v618
        %v620 = vpop.f32.mrb[0].mxu0
        %621 = vdwg.mxu0
        %v622 = vadd.f32 %v410, %v560
        %v623 = vadd.f32 %v413, %v563
        %v624 = vadd.f32 %v418, %v568
        %v625 = vadd.f32 %v421, %v571
        %v626 = vadd.f32 %v426, %v576
        %v627 = vadd.f32 %v429, %v579
        %v628 = vadd.f32 %v434, %v584
        %v629 = vadd.f32 %v437, %v587
        %v630 = vadd.f32 %v442, %v592
        %v631 = vadd.f32 %v445, %v595
        %v632 = vadd.f32 %v450, %v600
        %v633 = vadd.f32 %v453, %v603
        %v634 = vadd.f32 %v458, %v608
        %v635 = vadd.f32 %v461, %v611
        %v636 = vadd.f32 %v466, %v616
        %v637 = vadd.f32 %v469, %v619
        %s638 = scalar_lea.vmem %s169, 24
        %v639 = vld [vmem:[%s638] sm:$0xff]
        %v640 = vld [vmem:[%s638 + $0x8] sm:$0xff]
        %v641 = vld [vmem:[%s638 + $0x18] sm:$0xff]
        %v642 = vld [vmem:[%s638 + $0x20] sm:$0xff]
        %v643 = vld [vmem:[%s638 + $0x30] sm:$0xff]
        %v644 = vld [vmem:[%s638 + $0x38] sm:$0xff]
        %v645 = vld [vmem:[%s638 + $0x48] sm:$0xff]
        %v646 = vld [vmem:[%s638 + $0x50] sm:$0xff]
        %v647 = vld [vmem:[%s638 + $0x60] sm:$0xff]
        %v648 = vld [vmem:[%s638 + $0x68] sm:$0xff]
        %v649 = vld [vmem:[%s638 + $0x78] sm:$0xff]
        %v650 = vld [vmem:[%s638 + $0x80] sm:$0xff]
        %v651 = vld [vmem:[%s638 + $0x90] sm:$0xff]
        %v652 = vld [vmem:[%s638 + $0x98] sm:$0xff]
        %v653 = vld [vmem:[%s638 + $0xa8] sm:$0xff]
        %v654 = vld [vmem:[%s638 + $0xb0] sm:$0xff]
        %v655 = vpack.c.bf16 %v640, %v639
        %v656 = vpack.c.bf16 %v642, %v641
        %v657 = vpack.c.bf16 %v644, %v643
        %v658 = vpack.c.bf16 %v646, %v645
        %v659 = vpack.c.bf16 %v648, %v647
        %v660 = vpack.c.bf16 %v650, %v649
        %v661 = vpack.c.bf16 %v652, %v651
        %v662 = vpack.c.bf16 %v654, %v653
        %s663 = scalar_lea.vmem %s1, 6
        %v664 = vld [vmem:[%s663] sm:$0x3]
        %v666 = vsel %vm222, %v655, 0
        %v669 = vsel %vm222, %v656, 0
        %v672 = vsel %vm222, %v657, 0
        %v675 = vsel %vm222, %v658, 0
        %v678 = vsel %vm222, %v659, 0
        %v681 = vsel %vm222, %v660, 0
        %v684 = vsel %vm222, %v661, 0
        %v687 = vsel %vm222, %v662, 0
        %v690 = vsel %vm247, %v664, 0
        %692 = vmatprep.subr.bf16.mxu0 0
        %693 = vmatpush1.bf16.msra.mxu0 %v690
        %694 = vmatprep.subr.bf16.mxu0 0
        %695 = vmatpush1.bf16.msra.mxu0 0
        %696 = vmatprep.subr.bf16.mxu0 0
        %697 = vmatpush1.bf16.msra.mxu0 0
        %698 = vmatprep.subr.bf16.mxu0 0
        %699 = vmatpush1.bf16.msra.mxu0 0
        %700 = vmatprep.subr.bf16.mxu0 0
        %701 = vmatpush1.bf16.msra.mxu0 0
        %702 = vmatprep.subr.bf16.mxu0 0
        %703 = vmatpush1.bf16.msra.mxu0 0
        %704 = vmatprep.subr.bf16.mxu0 0
        %705 = vmatpush1.bf16.msra.mxu0 0
        %706 = vmatprep.subr.bf16.mxu0 0
        %707 = vmatpush1.bf16.msra.mxu0 0
        %708 = vmatprep.subr.bf16.mxu0 0
        %709 = vmatpush1.bf16.msra.mxu0 0
        %710 = vmatprep.subr.bf16.mxu0 0
        %711 = vmatpush1.bf16.msra.mxu0 0
        %712 = vmatprep.subr.bf16.mxu0 0
        %713 = vmatpush1.bf16.msra.mxu0 0
        %714 = vmatprep.subr.bf16.mxu0 0
        %715 = vmatpush1.bf16.msra.mxu0 0
        %716 = vmatprep.subr.bf16.mxu0 0
        %717 = vmatpush1.bf16.msra.mxu0 0
        %718 = vmatprep.subr.bf16.mxu0 0
        %719 = vmatpush1.bf16.msra.mxu0 0
        %720 = vmatprep.subr.bf16.mxu0 0
        %721 = vmatpush1.bf16.msra.mxu0 0
        %722 = vmatprep.subr.bf16.mxu0 0
        %723 = vmatpush1.bf16.msra.mxu0 0
        %724 = vmatprep.mubr.bf16.mxu0 0
        %725 = vmatmul.mubr.bf16.gmra.mrb[0].mxu0 %v666
        %v726 = vpop.f32.mrb[0].mxu0
        %v727 = vadd.f32 0.0, %v726
        %v728 = vpop.f32.mrb[0].mxu0
        %v729 = vpop.f32.mrb[0].mxu0
        %v730 = vadd.f32 0.0, %v729
        %v731 = vpop.f32.mrb[0].mxu0
        %732 = vmatprep.mubr.bf16.mxu0 0
        %733 = vmatmul.mubr.bf16.gmra.mrb[0].mxu0 %v669
        %v734 = vpop.f32.mrb[0].mxu0
        %v735 = vadd.f32 0.0, %v734
        %v736 = vpop.f32.mrb[0].mxu0
        %v737 = vpop.f32.mrb[0].mxu0
        %v738 = vadd.f32 0.0, %v737
        %v739 = vpop.f32.mrb[0].mxu0
        %740 = vmatprep.mubr.bf16.mxu0 0
        %741 = vmatmul.mubr.bf16.gmra.mrb[0].mxu0 %v672
        %v742 = vpop.f32.mrb[0].mxu0
        %v743 = vadd.f32 0.0, %v742
        %v744 = vpop.f32.mrb[0].mxu0
        %v745 = vpop.f32.mrb[0].mxu0
        %v746 = vadd.f32 0.0, %v745
        %v747 = vpop.f32.mrb[0].mxu0
        %748 = vmatprep.mubr.bf16.mxu0 0
        %749 = vmatmul.mubr.bf16.gmra.mrb[0].mxu0 %v675
        %v750 = vpop.f32.mrb[0].mxu0
        %v751 = vadd.f32 0.0, %v750
        %v752 = vpop.f32.mrb[0].mxu0
        %v753 = vpop.f32.mrb[0].mxu0
        %v754 = vadd.f32 0.0, %v753
        %v755 = vpop.f32.mrb[0].mxu0
        %756 = vmatprep.mubr.bf16.mxu0 0
        %757 = vmatmul.mubr.bf16.gmra.mrb[0].mxu0 %v678
        %v758 = vpop.f32.mrb[0].mxu0
        %v759 = vadd.f32 0.0, %v758
        %v760 = vpop.f32.mrb[0].mxu0
        %v761 = vpop.f32.mrb[0].mxu0
        %v762 = vadd.f32 0.0, %v761
        %v763 = vpop.f32.mrb[0].mxu0
        %764 = vmatprep.mubr.bf16.mxu0 0
        %765 = vmatmul.mubr.bf16.gmra.mrb[0].mxu0 %v681
        %v766 = vpop.f32.mrb[0].mxu0
        %v767 = vadd.f32 0.0, %v766
        %v768 = vpop.f32.mrb[0].mxu0
        %v769 = vpop.f32.mrb[0].mxu0
        %v770 = vadd.f32 0.0, %v769
        %v771 = vpop.f32.mrb[0].mxu0
        %772 = vmatprep.mubr.bf16.mxu0 0
        %773 = vmatmul.mubr.bf16.gmra.mrb[0].mxu0 %v684
        %v774 = vpop.f32.mrb[0].mxu0
        %v775 = vadd.f32 0.0, %v774
        %v776 = vpop.f32.mrb[0].mxu0
        %v777 = vpop.f32.mrb[0].mxu0
        %v778 = vadd.f32 0.0, %v777
        %v779 = vpop.f32.mrb[0].mxu0
        %780 = vmatprep.mubr.bf16.mxu0 0
        %781 = vmatmul.mubr.bf16.gmra.mrb[0].mxu0 %v687
        %v782 = vpop.f32.mrb[0].mxu0
        %v783 = vadd.f32 0.0, %v782
        %v784 = vpop.f32.mrb[0].mxu0
        %v785 = vpop.f32.mrb[0].mxu0
        %v786 = vadd.f32 0.0, %v785
        %v787 = vpop.f32.mrb[0].mxu0
        %788 = vdwg.mxu0
        %v789 = vadd.f32 %v622, %v727
        %v790 = vadd.f32 %v623, %v730
        %v791 = vadd.f32 %v624, %v735
        %v792 = vadd.f32 %v625, %v738
        %v793 = vadd.f32 %v626, %v743
        %v794 = vadd.f32 %v627, %v746
        %v795 = vadd.f32 %v628, %v751
        %v796 = vadd.f32 %v629, %v754
        %v797 = vadd.f32 %v630, %v759
        %v798 = vadd.f32 %v631, %v762
        %v799 = vadd.f32 %v632, %v767
        %v800 = vadd.f32 %v633, %v770
        %v801 = vadd.f32 %v634, %v775
        %v802 = vadd.f32 %v635, %v778
        %v803 = vadd.f32 %v636, %v783
        %v804 = vadd.f32 %v637, %v786
        %v805 = vld [vmem:[%s638 + $0x1] sm:$0xff]
        %v806 = vld [vmem:[%s638 + $0x9] sm:$0xff]
        %v807 = vld [vmem:[%s638 + $0x19] sm:$0xff]
        %v808 = vld [vmem:[%s638 + $0x21] sm:$0xff]
        %v809 = vld [vmem:[%s638 + $0x31] sm:$0xff]
        %v810 = vld [vmem:[%s638 + $0x39] sm:$0xff]
        %v811 = vld [vmem:[%s638 + $0x49] sm:$0xff]
        %v812 = vld [vmem:[%s638 + $0x51] sm:$0xff]
        %v813 = vld [vmem:[%s638 + $0x61] sm:$0xff]
        %v814 = vld [vmem:[%s638 + $0x69] sm:$0xff]
        %v815 = vld [vmem:[%s638 + $0x79] sm:$0xff]
        %v816 = vld [vmem:[%s638 + $0x81] sm:$0xff]
        %v817 = vld [vmem:[%s638 + $0x91] sm:$0xff]
        %v818 = vld [vmem:[%s638 + $0x99] sm:$0xff]
        %v819 = vld [vmem:[%s638 + $0xa9] sm:$0xff]
        %v820 = vld [vmem:[%s638 + $0xb1] sm:$0xff]
        %v821 = vpack.c.bf16 %v806, %v805
        %v822 = vpack.c.bf16 %v808, %v807
        %v823 = vpack.c.bf16 %v810, %v809
        %v824 = vpack.c.bf16 %v812, %v811
        %v825 = vpack.c.bf16 %v814, %v813
        %v826 = vpack.c.bf16 %v816, %v815
        %v827 = vpack.c.bf16 %v818, %v817
        %v828 = vpack.c.bf16 %v820, %v819
        %s829 = scalar_lea.vmem %s1, 8
        %v830 = vld [vmem:[%s829] sm:$0x3]
        %v832 = vsel %vm222, %v821, 0
        %v835 = vsel %vm222, %v822, 0
        %v838 = vsel %vm222, %v823, 0
        %v841 = vsel %vm222, %v824, 0
        %v844 = vsel %vm222, %v825, 0
        %v847 = vsel %vm222, %v826, 0
        %v850 = vsel %vm222, %v827, 0
        %v853 = vsel %vm222, %v828, 0
        %v856 = vsel %vm247, %v830, 0
        %858 = vmatprep.subr.bf16.mxu0 0
        %859 = vmatpush1.bf16.msra.mxu0 %v856
        %860 = vmatprep.subr.bf16.mxu0 0
        %861 = vmatpush1.bf16.msra.mxu0 0
        %862 = vmatprep.subr.bf16.mxu0 0
        %863 = vmatpush1.bf16.msra.mxu0 0
        %864 = vmatprep.subr.bf16.mxu0 0
        %865 = vmatpush1.bf16.msra.mxu0 0
        %866 = vmatprep.subr.bf16.mxu0 0
        %867 = vmatpush1.bf16.msra.mxu0 0
        %868 = vmatprep.subr.bf16.mxu0 0
        %869 = vmatpush1.bf16.msra.mxu0 0
        %870 = vmatprep.subr.bf16.mxu0 0
        %871 = vmatpush1.bf16.msra.mxu0 0
        %872 = vmatprep.subr.bf16.mxu0 0
        %873 = vmatpush1.bf16.msra.mxu0 0
        %874 = vmatprep.subr.bf16.mxu0 0
        %875 = vmatpush1.bf16.msra.mxu0 0
        %876 = vmatprep.subr.bf16.mxu0 0
        %877 = vmatpush1.bf16.msra.mxu0 0
        %878 = vmatprep.subr.bf16.mxu0 0
        %879 = vmatpush1.bf16.msra.mxu0 0
        %880 = vmatprep.subr.bf16.mxu0 0
        %881 = vmatpush1.bf16.msra.mxu0 0
        %882 = vmatprep.subr.bf16.mxu0 0
        %883 = vmatpush1.bf16.msra.mxu0 0
        %884 = vmatprep.subr.bf16.mxu0 0
        %885 = vmatpush1.bf16.msra.mxu0 0
        %886 = vmatprep.subr.bf16.mxu0 0
        %887 = vmatpush1.bf16.msra.mxu0 0
        %888 = vmatprep.subr.bf16.mxu0 0
        %889 = vmatpush1.bf16.msra.mxu0 0
        %890 = vmatprep.mubr.bf16.mxu0 0
        %891 = vmatmul.mubr.bf16.gmra.mrb[0].mxu0 %v832
        %v892 = vpop.f32.mrb[0].mxu0
        %v893 = vadd.f32 0.0, %v892
        %v894 = vpop.f32.mrb[0].mxu0
        %v895 = vpop.f32.mrb[0].mxu0
        %v896 = vadd.f32 0.0, %v895
        %v897 = vpop.f32.mrb[0].mxu0
        %898 = vmatprep.mubr.bf16.mxu0 0
        %899 = vmatmul.mubr.bf16.gmra.mrb[0].mxu0 %v835
        %v900 = vpop.f32.mrb[0].mxu0
        %v901 = vadd.f32 0.0, %v900
        %v902 = vpop.f32.mrb[0].mxu0
        %v903 = vpop.f32.mrb[0].mxu0
        %v904 = vadd.f32 0.0, %v903
        %v905 = vpop.f32.mrb[0].mxu0
        %906 = vmatprep.mubr.bf16.mxu0 0
        %907 = vmatmul.mubr.bf16.gmra.mrb[0].mxu0 %v838
        %v908 = vpop.f32.mrb[0].mxu0
        %v909 = vadd.f32 0.0, %v908
        %v910 = vpop.f32.mrb[0].mxu0
        %v911 = vpop.f32.mrb[0].mxu0
        %v912 = vadd.f32 0.0, %v911
        %v913 = vpop.f32.mrb[0].mxu0
        %914 = vmatprep.mubr.bf16.mxu0 0
        %915 = vmatmul.mubr.bf16.gmra.mrb[0].mxu0 %v841
        %v916 = vpop.f32.mrb[0].mxu0
        %v917 = vadd.f32 0.0, %v916
        %v918 = vpop.f32.mrb[0].mxu0
        %v919 = vpop.f32.mrb[0].mxu0
        %v920 = vadd.f32 0.0, %v919
        %v921 = vpop.f32.mrb[0].mxu0
        %922 = vmatprep.mubr.bf16.mxu0 0
        %923 = vmatmul.mubr.bf16.gmra.mrb[0].mxu0 %v844
        %v924 = vpop.f32.mrb[0].mxu0
        %v925 = vadd.f32 0.0, %v924
        %v926 = vpop.f32.mrb[0].mxu0
        %v927 = vpop.f32.mrb[0].mxu0
        %v928 = vadd.f32 0.0, %v927
        %v929 = vpop.f32.mrb[0].mxu0
        %930 = vmatprep.mubr.bf16.mxu0 0
        %931 = vmatmul.mubr.bf16.gmra.mrb[0].mxu0 %v847
        %v932 = vpop.f32.mrb[0].mxu0
        %v933 = vadd.f32 0.0, %v932
        %v934 = vpop.f32.mrb[0].mxu0
        %v935 = vpop.f32.mrb[0].mxu0
        %v936 = vadd.f32 0.0, %v935
        %v937 = vpop.f32.mrb[0].mxu0
        %938 = vmatprep.mubr.bf16.mxu0 0
        %939 = vmatmul.mubr.bf16.gmra.mrb[0].mxu0 %v850
        %v940 = vpop.f32.mrb[0].mxu0
        %v941 = vadd.f32 0.0, %v940
        %v942 = vpop.f32.mrb[0].mxu0
        %v943 = vpop.f32.mrb[0].mxu0
        %v944 = vadd.f32 0.0, %v943
        %v945 = vpop.f32.mrb[0].mxu0
        %946 = vmatprep.mubr.bf16.mxu0 0
        %947 = vmatmul.mubr.bf16.gmra.mrb[0].mxu0 %v853
        %v948 = vpop.f32.mrb[0].mxu0
        %v949 = vadd.f32 0.0, %v948
        %v950 = vpop.f32.mrb[0].mxu0
        %v951 = vpop.f32.mrb[0].mxu0
        %v952 = vadd.f32 0.0, %v951
        %v953 = vpop.f32.mrb[0].mxu0
        %954 = vdwg.mxu0
        %v955 = vadd.f32 %v789, %v893
        %v956 = vadd.f32 %v790, %v896
        %v957 = vadd.f32 %v791, %v901
        %v958 = vadd.f32 %v792, %v904
        %v959 = vadd.f32 %v793, %v909
        %v960 = vadd.f32 %v794, %v912
        %v961 = vadd.f32 %v795, %v917
        %v962 = vadd.f32 %v796, %v920
        %v963 = vadd.f32 %v797, %v925
        %v964 = vadd.f32 %v798, %v928
        %v965 = vadd.f32 %v799, %v933
        %v966 = vadd.f32 %v800, %v936
        %v967 = vadd.f32 %v801, %v941
        %v968 = vadd.f32 %v802, %v944
        %v969 = vadd.f32 %v803, %v949
        %v970 = vadd.f32 %v804, %v952
        %v971 = vld [vmem:[%s638 + $0x2] sm:$0xff]
        %v972 = vld [vmem:[%s638 + $0xa] sm:$0xff]
        %v973 = vld [vmem:[%s638 + $0x1a] sm:$0xff]
        %v974 = vld [vmem:[%s638 + $0x22] sm:$0xff]
        %v975 = vld [vmem:[%s638 + $0x32] sm:$0xff]
        %v976 = vld [vmem:[%s638 + $0x3a] sm:$0xff]
        %v977 = vld [vmem:[%s638 + $0x4a] sm:$0xff]
        %v978 = vld [vmem:[%s638 + $0x52] sm:$0xff]
        %v979 = vld [vmem:[%s638 + $0x62] sm:$0xff]
        %v980 = vld [vmem:[%s638 + $0x6a] sm:$0xff]
        %v981 = vld [vmem:[%s638 + $0x7a] sm:$0xff]
        %v982 = vld [vmem:[%s638 + $0x82] sm:$0xff]
        %v983 = vld [vmem:[%s638 + $0x92] sm:$0xff]
        %v984 = vld [vmem:[%s638 + $0x9a] sm:$0xff]
        %v985 = vld [vmem:[%s638 + $0xaa] sm:$0xff]
        %v986 = vld [vmem:[%s638 + $0xb2] sm:$0xff]
        %v987 = vpack.c.bf16 %v972, %v971
        %v988 = vpack.c.bf16 %v974, %v973
        %v989 = vpack.c.bf16 %v976, %v975
        %v990 = vpack.c.bf16 %v978, %v977
        %v991 = vpack.c.bf16 %v980, %v979
        %v992 = vpack.c.bf16 %v982, %v981
        %v993 = vpack.c.bf16 %v984, %v983
        %v994 = vpack.c.bf16 %v986, %v985
        %s995 = scalar_lea.vmem %s1, 10
        %v996 = vld [vmem:[%s995] sm:$0x3]
        %v998 = vsel %vm222, %v987, 0
        %v1001 = vsel %vm222, %v988, 0
        %v1004 = vsel %vm222, %v989, 0
        %v1007 = vsel %vm222, %v990, 0
        %v1010 = vsel %vm222, %v991, 0
        %v1013 = vsel %vm222, %v992, 0
        %v1016 = vsel %vm222, %v993, 0
        %v1019 = vsel %vm222, %v994, 0
        %v1022 = vsel %vm247, %v996, 0
        %1024 = vmatprep.subr.bf16.mxu0 0
        %1025 = vmatpush1.bf16.msra.mxu0 %v1022
        %1026 = vmatprep.subr.bf16.mxu0 0
        %1027 = vmatpush1.bf16.msra.mxu0 0
        %1028 = vmatprep.subr.bf16.mxu0 0
        %1029 = vmatpush1.bf16.msra.mxu0 0
        %1030 = vmatprep.subr.bf16.mxu0 0
        %1031 = vmatpush1.bf16.msra.mxu0 0
        %1032 = vmatprep.subr.bf16.mxu0 0
        %1033 = vmatpush1.bf16.msra.mxu0 0
        %1034 = vmatprep.subr.bf16.mxu0 0
        %1035 = vmatpush1.bf16.msra.mxu0 0
        %1036 = vmatprep.subr.bf16.mxu0 0
        %1037 = vmatpush1.bf16.msra.mxu0 0
        %1038 = vmatprep.subr.bf16.mxu0 0
        %1039 = vmatpush1.bf16.msra.mxu0 0
        %1040 = vmatprep.subr.bf16.mxu0 0
        %1041 = vmatpush1.bf16.msra.mxu0 0
        %1042 = vmatprep.subr.bf16.mxu0 0
        %1043 = vmatpush1.bf16.msra.mxu0 0
        %1044 = vmatprep.subr.bf16.mxu0 0
        %1045 = vmatpush1.bf16.msra.mxu0 0
        %1046 = vmatprep.subr.bf16.mxu0 0
        %1047 = vmatpush1.bf16.msra.mxu0 0
        %1048 = vmatprep.subr.bf16.mxu0 0
        %1049 = vmatpush1.bf16.msra.mxu0 0
        %1050 = vmatprep.subr.bf16.mxu0 0
        %1051 = vmatpush1.bf16.msra.mxu0 0
        %1052 = vmatprep.subr.bf16.mxu0 0
        %1053 = vmatpush1.bf16.msra.mxu0 0
        %1054 = vmatprep.subr.bf16.mxu0 0
        %1055 = vmatpush1.bf16.msra.mxu0 0
        %1056 = vmatprep.mubr.bf16.mxu0 0
        %1057 = vmatmul.mubr.bf16.gmra.mrb[0].mxu0 %v998
        %v1058 = vpop.f32.mrb[0].mxu0
        %v1059 = vadd.f32 0.0, %v1058
        %v1060 = vpop.f32.mrb[0].mxu0
        %v1061 = vpop.f32.mrb[0].mxu0
        %v1062 = vadd.f32 0.0, %v1061
        %v1063 = vpop.f32.mrb[0].mxu0
        %1064 = vmatprep.mubr.bf16.mxu0 0
        %1065 = vmatmul.mubr.bf16.gmra.mrb[0].mxu0 %v1001
        %v1066 = vpop.f32.mrb[0].mxu0
        %v1067 = vadd.f32 0.0, %v1066
        %v1068 = vpop.f32.mrb[0].mxu0
        %v1069 = vpop.f32.mrb[0].mxu0
        %v1070 = vadd.f32 0.0, %v1069
        %v1071 = vpop.f32.mrb[0].mxu0
        %1072 = vmatprep.mubr.bf16.mxu0 0
        %1073 = vmatmul.mubr.bf16.gmra.mrb[0].mxu0 %v1004
        %v1074 = vpop.f32.mrb[0].mxu0
        %v1075 = vadd.f32 0.0, %v1074
        %v1076 = vpop.f32.mrb[0].mxu0
        %v1077 = vpop.f32.mrb[0].mxu0
        %v1078 = vadd.f32 0.0, %v1077
        %v1079 = vpop.f32.mrb[0].mxu0
        %1080 = vmatprep.mubr.bf16.mxu0 0
        %1081 = vmatmul.mubr.bf16.gmra.mrb[0].mxu0 %v1007
        %v1082 = vpop.f32.mrb[0].mxu0
        %v1083 = vadd.f32 0.0, %v1082
        %v1084 = vpop.f32.mrb[0].mxu0
        %v1085 = vpop.f32.mrb[0].mxu0
        %v1086 = vadd.f32 0.0, %v1085
        %v1087 = vpop.f32.mrb[0].mxu0
        %1088 = vmatprep.mubr.bf16.mxu0 0
        %1089 = vmatmul.mubr.bf16.gmra.mrb[0].mxu0 %v1010
        %v1090 = vpop.f32.mrb[0].mxu0
        %v1091 = vadd.f32 0.0, %v1090
        %v1092 = vpop.f32.mrb[0].mxu0
        %v1093 = vpop.f32.mrb[0].mxu0
        %v1094 = vadd.f32 0.0, %v1093
        %v1095 = vpop.f32.mrb[0].mxu0
        %1096 = vmatprep.mubr.bf16.mxu0 0
        %1097 = vmatmul.mubr.bf16.gmra.mrb[0].mxu0 %v1013
        %v1098 = vpop.f32.mrb[0].mxu0
        %v1099 = vadd.f32 0.0, %v1098
        %v1100 = vpop.f32.mrb[0].mxu0
        %v1101 = vpop.f32.mrb[0].mxu0
        %v1102 = vadd.f32 0.0, %v1101
        %v1103 = vpop.f32.mrb[0].mxu0
        %1104 = vmatprep.mubr.bf16.mxu0 0
        %1105 = vmatmul.mubr.bf16.gmra.mrb[0].mxu0 %v1016
        %v1106 = vpop.f32.mrb[0].mxu0
        %v1107 = vadd.f32 0.0, %v1106
        %v1108 = vpop.f32.mrb[0].mxu0
        %v1109 = vpop.f32.mrb[0].mxu0
        %v1110 = vadd.f32 0.0, %v1109
        %v1111 = vpop.f32.mrb[0].mxu0
        %1112 = vmatprep.mubr.bf16.mxu0 0
        %1113 = vmatmul.mubr.bf16.gmra.mrb[0].mxu0 %v1019
        %v1114 = vpop.f32.mrb[0].mxu0
        %v1115 = vadd.f32 0.0, %v1114
        %v1116 = vpop.f32.mrb[0].mxu0
        %v1117 = vpop.f32.mrb[0].mxu0
        %v1118 = vadd.f32 0.0, %v1117
        %v1119 = vpop.f32.mrb[0].mxu0
        %1120 = vdwg.mxu0
        %v1121 = vadd.f32 %v955, %v1059
        %v1122 = vadd.f32 %v956, %v1062
        %v1123 = vadd.f32 %v957, %v1067
        %v1124 = vadd.f32 %v958, %v1070
        %v1125 = vadd.f32 %v959, %v1075
        %v1126 = vadd.f32 %v960, %v1078
        %v1127 = vadd.f32 %v961, %v1083
        %v1128 = vadd.f32 %v962, %v1086
        %v1129 = vadd.f32 %v963, %v1091
        %v1130 = vadd.f32 %v964, %v1094
        %v1131 = vadd.f32 %v965, %v1099
        %v1132 = vadd.f32 %v966, %v1102
        %v1133 = vadd.f32 %v967, %v1107
        %v1134 = vadd.f32 %v968, %v1110
        %v1135 = vadd.f32 %v969, %v1115
        %v1136 = vadd.f32 %v970, %v1118
        %s1137 = scalar_lea.vmem %s169, 48
        %v1138 = vld [vmem:[%s1137] sm:$0xff]
        %v1139 = vld [vmem:[%s1137 + $0x8] sm:$0xff]
        %v1140 = vld [vmem:[%s1137 + $0x18] sm:$0xff]
        %v1141 = vld [vmem:[%s1137 + $0x20] sm:$0xff]
        %v1142 = vld [vmem:[%s1137 + $0x30] sm:$0xff]
        %v1143 = vld [vmem:[%s1137 + $0x38] sm:$0xff]
        %v1144 = vld [vmem:[%s1137 + $0x48] sm:$0xff]
        %v1145 = vld [vmem:[%s1137 + $0x50] sm:$0xff]
        %v1146 = vld [vmem:[%s1137 + $0x60] sm:$0xff]
        %v1147 = vld [vmem:[%s1137 + $0x68] sm:$0xff]
        %v1148 = vld [vmem:[%s1137 + $0x78] sm:$0xff]
        %v1149 = vld [vmem:[%s1137 + $0x80] sm:$0xff]
        %v1150 = vld [vmem:[%s1137 + $0x90] sm:$0xff]
        %v1151 = vld [vmem:[%s1137 + $0x98] sm:$0xff]
        %v1152 = vld [vmem:[%s1137 + $0xa8] sm:$0xff]
        %v1153 = vld [vmem:[%s1137 + $0xb0] sm:$0xff]
        %v1154 = vpack.c.bf16 %v1139, %v1138
        %v1155 = vpack.c.bf16 %v1141, %v1140
        %v1156 = vpack.c.bf16 %v1143, %v1142
        %v1157 = vpack.c.bf16 %v1145, %v1144
        %v1158 = vpack.c.bf16 %v1147, %v1146
        %v1159 = vpack.c.bf16 %v1149, %v1148
        %v1160 = vpack.c.bf16 %v1151, %v1150
        %v1161 = vpack.c.bf16 %v1153, %v1152
        %s1162 = scalar_lea.vmem %s1, 12
        %v1163 = vld [vmem:[%s1162] sm:$0x3]
        %v1165 = vsel %vm222, %v1154, 0
        %v1168 = vsel %vm222, %v1155, 0
        %v1171 = vsel %vm222, %v1156, 0
        %v1174 = vsel %vm222, %v1157, 0
        %v1177 = vsel %vm222, %v1158, 0
        %v1180 = vsel %vm222, %v1159, 0
        %v1183 = vsel %vm222, %v1160, 0
        %v1186 = vsel %vm222, %v1161, 0
        %v1189 = vsel %vm247, %v1163, 0
        %1191 = vmatprep.subr.bf16.mxu0 0
        %1192 = vmatpush1.bf16.msra.mxu0 %v1189
        %1193 = vmatprep.subr.bf16.mxu0 0
        %1194 = vmatpush1.bf16.msra.mxu0 0
        %1195 = vmatprep.subr.bf16.mxu0 0
        %1196 = vmatpush1.bf16.msra.mxu0 0
        %1197 = vmatprep.subr.bf16.mxu0 0
        %1198 = vmatpush1.bf16.msra.mxu0 0
        %1199 = vmatprep.subr.bf16.mxu0 0
        %1200 = vmatpush1.bf16.msra.mxu0 0
        %1201 = vmatprep.subr.bf16.mxu0 0
        %1202 = vmatpush1.bf16.msra.mxu0 0
        %1203 = vmatprep.subr.bf16.mxu0 0
        %1204 = vmatpush1.bf16.msra.mxu0 0
        %1205 = vmatprep.subr.bf16.mxu0 0
        %1206 = vmatpush1.bf16.msra.mxu0 0
        %1207 = vmatprep.subr.bf16.mxu0 0
        %1208 = vmatpush1.bf16.msra.mxu0 0
        %1209 = vmatprep.subr.bf16.mxu0 0
        %1210 = vmatpush1.bf16.msra.mxu0 0
        %1211 = vmatprep.subr.bf16.mxu0 0
        %1212 = vmatpush1.bf16.msra.mxu0 0
        %1213 = vmatprep.subr.bf16.mxu0 0
        %1214 = vmatpush1.bf16.msra.mxu0 0
        %1215 = vmatprep.subr.bf16.mxu0 0
        %1216 = vmatpush1.bf16.msra.mxu0 0
        %1217 = vmatprep.subr.bf16.mxu0 0
        %1218 = vmatpush1.bf16.msra.mxu0 0
        %1219 = vmatprep.subr.bf16.mxu0 0
        %1220 = vmatpush1.bf16.msra.mxu0 0
        %1221 = vmatprep.subr.bf16.mxu0 0
        %1222 = vmatpush1.bf16.msra.mxu0 0
        %1223 = vmatprep.mubr.bf16.mxu0 0
        %1224 = vmatmul.mubr.bf16.gmra.mrb[0].mxu0 %v1165
        %v1225 = vpop.f32.mrb[0].mxu0
        %v1226 = vadd.f32 0.0, %v1225
        %v1227 = vpop.f32.mrb[0].mxu0
        %v1228 = vpop.f32.mrb[0].mxu0
        %v1229 = vadd.f32 0.0, %v1228
        %v1230 = vpop.f32.mrb[0].mxu0
        %1231 = vmatprep.mubr.bf16.mxu0 0
        %1232 = vmatmul.mubr.bf16.gmra.mrb[0].mxu0 %v1168
        %v1233 = vpop.f32.mrb[0].mxu0
        %v1234 = vadd.f32 0.0, %v1233
        %v1235 = vpop.f32.mrb[0].mxu0
        %v1236 = vpop.f32.mrb[0].mxu0
        %v1237 = vadd.f32 0.0, %v1236
        %v1238 = vpop.f32.mrb[0].mxu0
        %1239 = vmatprep.mubr.bf16.mxu0 0
        %1240 = vmatmul.mubr.bf16.gmra.mrb[0].mxu0 %v1171
        %v1241 = vpop.f32.mrb[0].mxu0
        %v1242 = vadd.f32 0.0, %v1241
        %v1243 = vpop.f32.mrb[0].mxu0
        %v1244 = vpop.f32.mrb[0].mxu0
        %v1245 = vadd.f32 0.0, %v1244
        %v1246 = vpop.f32.mrb[0].mxu0
        %1247 = vmatprep.mubr.bf16.mxu0 0
        %1248 = vmatmul.mubr.bf16.gmra.mrb[0].mxu0 %v1174
        %v1249 = vpop.f32.mrb[0].mxu0
        %v1250 = vadd.f32 0.0, %v1249
        %v1251 = vpop.f32.mrb[0].mxu0
        %v1252 = vpop.f32.mrb[0].mxu0
        %v1253 = vadd.f32 0.0, %v1252
        %v1254 = vpop.f32.mrb[0].mxu0
        %1255 = vmatprep.mubr.bf16.mxu0 0
        %1256 = vmatmul.mubr.bf16.gmra.mrb[0].mxu0 %v1177
        %v1257 = vpop.f32.mrb[0].mxu0
        %v1258 = vadd.f32 0.0, %v1257
        %v1259 = vpop.f32.mrb[0].mxu0
        %v1260 = vpop.f32.mrb[0].mxu0
        %v1261 = vadd.f32 0.0, %v1260
        %v1262 = vpop.f32.mrb[0].mxu0
        %1263 = vmatprep.mubr.bf16.mxu0 0
        %1264 = vmatmul.mubr.bf16.gmra.mrb[0].mxu0 %v1180
        %v1265 = vpop.f32.mrb[0].mxu0
        %v1266 = vadd.f32 0.0, %v1265
        %v1267 = vpop.f32.mrb[0].mxu0
        %v1268 = vpop.f32.mrb[0].mxu0
        %v1269 = vadd.f32 0.0, %v1268
        %v1270 = vpop.f32.mrb[0].mxu0
        %1271 = vmatprep.mubr.bf16.mxu0 0
        %1272 = vmatmul.mubr.bf16.gmra.mrb[0].mxu0 %v1183
        %v1273 = vpop.f32.mrb[0].mxu0
        %v1274 = vadd.f32 0.0, %v1273
        %v1275 = vpop.f32.mrb[0].mxu0
        %v1276 = vpop.f32.mrb[0].mxu0
        %v1277 = vadd.f32 0.0, %v1276
        %v1278 = vpop.f32.mrb[0].mxu0
        %1279 = vmatprep.mubr.bf16.mxu0 0
        %1280 = vmatmul.mubr.bf16.gmra.mrb[0].mxu0 %v1186
        %v1281 = vpop.f32.mrb[0].mxu0
        %v1282 = vadd.f32 0.0, %v1281
        %v1283 = vpop.f32.mrb[0].mxu0
        %v1284 = vpop.f32.mrb[0].mxu0
        %v1285 = vadd.f32 0.0, %v1284
        %v1286 = vpop.f32.mrb[0].mxu0
        %1287 = vdwg.mxu0
        %v1288 = vadd.f32 %v1121, %v1226
        %v1289 = vadd.f32 %v1122, %v1229
        %v1290 = vadd.f32 %v1123, %v1234
        %v1291 = vadd.f32 %v1124, %v1237
        %v1292 = vadd.f32 %v1125, %v1242
        %v1293 = vadd.f32 %v1126, %v1245
        %v1294 = vadd.f32 %v1127, %v1250
        %v1295 = vadd.f32 %v1128, %v1253
        %v1296 = vadd.f32 %v1129, %v1258
        %v1297 = vadd.f32 %v1130, %v1261
        %v1298 = vadd.f32 %v1131, %v1266
        %v1299 = vadd.f32 %v1132, %v1269
        %v1300 = vadd.f32 %v1133, %v1274
        %v1301 = vadd.f32 %v1134, %v1277
        %v1302 = vadd.f32 %v1135, %v1282
        %v1303 = vadd.f32 %v1136, %v1285
        %v1304 = vld [vmem:[%s1137 + $0x1] sm:$0xff]
        %v1305 = vld [vmem:[%s1137 + $0x9] sm:$0xff]
        %v1306 = vld [vmem:[%s1137 + $0x19] sm:$0xff]
        %v1307 = vld [vmem:[%s1137 + $0x21] sm:$0xff]
        %v1308 = vld [vmem:[%s1137 + $0x31] sm:$0xff]
        %v1309 = vld [vmem:[%s1137 + $0x39] sm:$0xff]
        %v1310 = vld [vmem:[%s1137 + $0x49] sm:$0xff]
        %v1311 = vld [vmem:[%s1137 + $0x51] sm:$0xff]
        %v1312 = vld [vmem:[%s1137 + $0x61] sm:$0xff]
        %v1313 = vld [vmem:[%s1137 + $0x69] sm:$0xff]
        %v1314 = vld [vmem:[%s1137 + $0x79] sm:$0xff]
        %v1315 = vld [vmem:[%s1137 + $0x81] sm:$0xff]
        %v1316 = vld [vmem:[%s1137 + $0x91] sm:$0xff]
        %v1317 = vld [vmem:[%s1137 + $0x99] sm:$0xff]
        %v1318 = vld [vmem:[%s1137 + $0xa9] sm:$0xff]
        %v1319 = vld [vmem:[%s1137 + $0xb1] sm:$0xff]
        %v1320 = vpack.c.bf16 %v1305, %v1304
        %v1321 = vpack.c.bf16 %v1307, %v1306
        %v1322 = vpack.c.bf16 %v1309, %v1308
        %v1323 = vpack.c.bf16 %v1311, %v1310
        %v1324 = vpack.c.bf16 %v1313, %v1312
        %v1325 = vpack.c.bf16 %v1315, %v1314
        %v1326 = vpack.c.bf16 %v1317, %v1316
        %v1327 = vpack.c.bf16 %v1319, %v1318
        %s1328 = scalar_lea.vmem %s1, 14
        %v1329 = vld [vmem:[%s1328] sm:$0x3]
        %v1331 = vsel %vm222, %v1320, 0
        %v1334 = vsel %vm222, %v1321, 0
        %v1337 = vsel %vm222, %v1322, 0
        %v1340 = vsel %vm222, %v1323, 0
        %v1343 = vsel %vm222, %v1324, 0
        %v1346 = vsel %vm222, %v1325, 0
        %v1349 = vsel %vm222, %v1326, 0
        %v1352 = vsel %vm222, %v1327, 0
        %v1355 = vsel %vm247, %v1329, 0
        %1357 = vmatprep.subr.bf16.mxu0 0
        %1358 = vmatpush1.bf16.msra.mxu0 %v1355
        %1359 = vmatprep.subr.bf16.mxu0 0
        %1360 = vmatpush1.bf16.msra.mxu0 0
        %1361 = vmatprep.subr.bf16.mxu0 0
        %1362 = vmatpush1.bf16.msra.mxu0 0
        %1363 = vmatprep.subr.bf16.mxu0 0
        %1364 = vmatpush1.bf16.msra.mxu0 0
        %1365 = vmatprep.subr.bf16.mxu0 0
        %1366 = vmatpush1.bf16.msra.mxu0 0
        %1367 = vmatprep.subr.bf16.mxu0 0
        %1368 = vmatpush1.bf16.msra.mxu0 0
        %1369 = vmatprep.subr.bf16.mxu0 0
        %1370 = vmatpush1.bf16.msra.mxu0 0
        %1371 = vmatprep.subr.bf16.mxu0 0
        %1372 = vmatpush1.bf16.msra.mxu0 0
        %1373 = vmatprep.subr.bf16.mxu0 0
        %1374 = vmatpush1.bf16.msra.mxu0 0
        %1375 = vmatprep.subr.bf16.mxu0 0
        %1376 = vmatpush1.bf16.msra.mxu0 0
        %1377 = vmatprep.subr.bf16.mxu0 0
        %1378 = vmatpush1.bf16.msra.mxu0 0
        %1379 = vmatprep.subr.bf16.mxu0 0
        %1380 = vmatpush1.bf16.msra.mxu0 0
        %1381 = vmatprep.subr.bf16.mxu0 0
        %1382 = vmatpush1.bf16.msra.mxu0 0
        %1383 = vmatprep.subr.bf16.mxu0 0
        %1384 = vmatpush1.bf16.msra.mxu0 0
        %1385 = vmatprep.subr.bf16.mxu0 0
        %1386 = vmatpush1.bf16.msra.mxu0 0
        %1387 = vmatprep.subr.bf16.mxu0 0
        %1388 = vmatpush1.bf16.msra.mxu0 0
        %1389 = vmatprep.mubr.bf16.mxu0 0
        %1390 = vmatmul.mubr.bf16.gmra.mrb[0].mxu0 %v1331
        %v1391 = vpop.f32.mrb[0].mxu0
        %v1392 = vadd.f32 0.0, %v1391
        %v1393 = vpop.f32.mrb[0].mxu0
        %v1394 = vpop.f32.mrb[0].mxu0
        %v1395 = vadd.f32 0.0, %v1394
        %v1396 = vpop.f32.mrb[0].mxu0
        %1397 = vmatprep.mubr.bf16.mxu0 0
        %1398 = vmatmul.mubr.bf16.gmra.mrb[0].mxu0 %v1334
        %v1399 = vpop.f32.mrb[0].mxu0
        %v1400 = vadd.f32 0.0, %v1399
        %v1401 = vpop.f32.mrb[0].mxu0
        %v1402 = vpop.f32.mrb[0].mxu0
        %v1403 = vadd.f32 0.0, %v1402
        %v1404 = vpop.f32.mrb[0].mxu0
        %1405 = vmatprep.mubr.bf16.mxu0 0
        %1406 = vmatmul.mubr.bf16.gmra.mrb[0].mxu0 %v1337
        %v1407 = vpop.f32.mrb[0].mxu0
        %v1408 = vadd.f32 0.0, %v1407
        %v1409 = vpop.f32.mrb[0].mxu0
        %v1410 = vpop.f32.mrb[0].mxu0
        %v1411 = vadd.f32 0.0, %v1410
        %v1412 = vpop.f32.mrb[0].mxu0
        %1413 = vmatprep.mubr.bf16.mxu0 0
        %1414 = vmatmul.mubr.bf16.gmra.mrb[0].mxu0 %v1340
        %v1415 = vpop.f32.mrb[0].mxu0
        %v1416 = vadd.f32 0.0, %v1415
        %v1417 = vpop.f32.mrb[0].mxu0
        %v1418 = vpop.f32.mrb[0].mxu0
        %v1419 = vadd.f32 0.0, %v1418
        %v1420 = vpop.f32.mrb[0].mxu0
        %1421 = vmatprep.mubr.bf16.mxu0 0
        %1422 = vmatmul.mubr.bf16.gmra.mrb[0].mxu0 %v1343
        %v1423 = vpop.f32.mrb[0].mxu0
        %v1424 = vadd.f32 0.0, %v1423
        %v1425 = vpop.f32.mrb[0].mxu0
        %v1426 = vpop.f32.mrb[0].mxu0
        %v1427 = vadd.f32 0.0, %v1426
        %v1428 = vpop.f32.mrb[0].mxu0
        %1429 = vmatprep.mubr.bf16.mxu0 0
        %1430 = vmatmul.mubr.bf16.gmra.mrb[0].mxu0 %v1346
        %v1431 = vpop.f32.mrb[0].mxu0
        %v1432 = vadd.f32 0.0, %v1431
        %v1433 = vpop.f32.mrb[0].mxu0
        %v1434 = vpop.f32.mrb[0].mxu0
        %v1435 = vadd.f32 0.0, %v1434
        %v1436 = vpop.f32.mrb[0].mxu0
        %1437 = vmatprep.mubr.bf16.mxu0 0
        %1438 = vmatmul.mubr.bf16.gmra.mrb[0].mxu0 %v1349
        %v1439 = vpop.f32.mrb[0].mxu0
        %v1440 = vadd.f32 0.0, %v1439
        %v1441 = vpop.f32.mrb[0].mxu0
        %v1442 = vpop.f32.mrb[0].mxu0
        %v1443 = vadd.f32 0.0, %v1442
        %v1444 = vpop.f32.mrb[0].mxu0
        %1445 = vmatprep.mubr.bf16.mxu0 0
        %1446 = vmatmul.mubr.bf16.gmra.mrb[0].mxu0 %v1352
        %v1447 = vpop.f32.mrb[0].mxu0
        %v1448 = vadd.f32 0.0, %v1447
        %v1449 = vpop.f32.mrb[0].mxu0
        %v1450 = vpop.f32.mrb[0].mxu0
        %v1451 = vadd.f32 0.0, %v1450
        %v1452 = vpop.f32.mrb[0].mxu0
        %1453 = vdwg.mxu0
        %v1454 = vadd.f32 %v1288, %v1392
        %v1455 = vadd.f32 %v1289, %v1395
        %v1456 = vadd.f32 %v1290, %v1400
        %v1457 = vadd.f32 %v1291, %v1403
        %v1458 = vadd.f32 %v1292, %v1408
        %v1459 = vadd.f32 %v1293, %v1411
        %v1460 = vadd.f32 %v1294, %v1416
        %v1461 = vadd.f32 %v1295, %v1419
        %v1462 = vadd.f32 %v1296, %v1424
        %v1463 = vadd.f32 %v1297, %v1427
        %v1464 = vadd.f32 %v1298, %v1432
        %v1465 = vadd.f32 %v1299, %v1435
        %v1466 = vadd.f32 %v1300, %v1440
        %v1467 = vadd.f32 %v1301, %v1443
        %v1468 = vadd.f32 %v1302, %v1448
        %v1469 = vadd.f32 %v1303, %v1451
        %v1470 = vld [vmem:[%s1137 + $0x2] sm:$0xff]
        %v1471 = vld [vmem:[%s1137 + $0xa] sm:$0xff]
        %v1472 = vld [vmem:[%s1137 + $0x1a] sm:$0xff]
        %v1473 = vld [vmem:[%s1137 + $0x22] sm:$0xff]
        %v1474 = vld [vmem:[%s1137 + $0x32] sm:$0xff]
        %v1475 = vld [vmem:[%s1137 + $0x3a] sm:$0xff]
        %v1476 = vld [vmem:[%s1137 + $0x4a] sm:$0xff]
        %v1477 = vld [vmem:[%s1137 + $0x52] sm:$0xff]
        %v1478 = vld [vmem:[%s1137 + $0x62] sm:$0xff]
        %v1479 = vld [vmem:[%s1137 + $0x6a] sm:$0xff]
        %v1480 = vld [vmem:[%s1137 + $0x7a] sm:$0xff]
        %v1481 = vld [vmem:[%s1137 + $0x82] sm:$0xff]
        %v1482 = vld [vmem:[%s1137 + $0x92] sm:$0xff]
        %v1483 = vld [vmem:[%s1137 + $0x9a] sm:$0xff]
        %v1484 = vld [vmem:[%s1137 + $0xaa] sm:$0xff]
        %v1485 = vld [vmem:[%s1137 + $0xb2] sm:$0xff]
        %v1486 = vpack.c.bf16 %v1471, %v1470
        %v1487 = vpack.c.bf16 %v1473, %v1472
        %v1488 = vpack.c.bf16 %v1475, %v1474
        %v1489 = vpack.c.bf16 %v1477, %v1476
        %v1490 = vpack.c.bf16 %v1479, %v1478
        %v1491 = vpack.c.bf16 %v1481, %v1480
        %v1492 = vpack.c.bf16 %v1483, %v1482
        %v1493 = vpack.c.bf16 %v1485, %v1484
        %s1494 = scalar_lea.vmem %s1, 16
        %v1495 = vld [vmem:[%s1494] sm:$0x3]
        %v1497 = vsel %vm222, %v1486, 0
        %v1500 = vsel %vm222, %v1487, 0
        %v1503 = vsel %vm222, %v1488, 0
        %v1506 = vsel %vm222, %v1489, 0
        %v1509 = vsel %vm222, %v1490, 0
        %v1512 = vsel %vm222, %v1491, 0
        %v1515 = vsel %vm222, %v1492, 0
        %v1518 = vsel %vm222, %v1493, 0
        %v1521 = vsel %vm247, %v1495, 0
        %1523 = vmatprep.subr.bf16.mxu0 0
        %1524 = vmatpush1.bf16.msra.mxu0 %v1521
        %1525 = vmatprep.subr.bf16.mxu0 0
        %1526 = vmatpush1.bf16.msra.mxu0 0
        %1527 = vmatprep.subr.bf16.mxu0 0
        %1528 = vmatpush1.bf16.msra.mxu0 0
        %1529 = vmatprep.subr.bf16.mxu0 0
        %1530 = vmatpush1.bf16.msra.mxu0 0
        %1531 = vmatprep.subr.bf16.mxu0 0
        %1532 = vmatpush1.bf16.msra.mxu0 0
        %1533 = vmatprep.subr.bf16.mxu0 0
        %1534 = vmatpush1.bf16.msra.mxu0 0
        %1535 = vmatprep.subr.bf16.mxu0 0
        %1536 = vmatpush1.bf16.msra.mxu0 0
        %1537 = vmatprep.subr.bf16.mxu0 0
        %1538 = vmatpush1.bf16.msra.mxu0 0
        %1539 = vmatprep.subr.bf16.mxu0 0
        %1540 = vmatpush1.bf16.msra.mxu0 0
        %1541 = vmatprep.subr.bf16.mxu0 0
        %1542 = vmatpush1.bf16.msra.mxu0 0
        %1543 = vmatprep.subr.bf16.mxu0 0
        %1544 = vmatpush1.bf16.msra.mxu0 0
        %1545 = vmatprep.subr.bf16.mxu0 0
        %1546 = vmatpush1.bf16.msra.mxu0 0
        %1547 = vmatprep.subr.bf16.mxu0 0
        %1548 = vmatpush1.bf16.msra.mxu0 0
        %1549 = vmatprep.subr.bf16.mxu0 0
        %1550 = vmatpush1.bf16.msra.mxu0 0
        %1551 = vmatprep.subr.bf16.mxu0 0
        %1552 = vmatpush1.bf16.msra.mxu0 0
        %1553 = vmatprep.subr.bf16.mxu0 0
        %1554 = vmatpush1.bf16.msra.mxu0 0
        %1555 = vmatprep.mubr.bf16.mxu0 0
        %1556 = vmatmul.mubr.bf16.gmra.mrb[0].mxu0 %v1497
        %v1557 = vpop.f32.mrb[0].mxu0
        %v1558 = vadd.f32 0.0, %v1557
        %v1559 = vpop.f32.mrb[0].mxu0
        %v1560 = vpop.f32.mrb[0].mxu0
        %v1561 = vadd.f32 0.0, %v1560
        %v1562 = vpop.f32.mrb[0].mxu0
        %1563 = vmatprep.mubr.bf16.mxu0 0
        %1564 = vmatmul.mubr.bf16.gmra.mrb[0].mxu0 %v1500
        %v1565 = vpop.f32.mrb[0].mxu0
        %v1566 = vadd.f32 0.0, %v1565
        %v1567 = vpop.f32.mrb[0].mxu0
        %v1568 = vpop.f32.mrb[0].mxu0
        %v1569 = vadd.f32 0.0, %v1568
        %v1570 = vpop.f32.mrb[0].mxu0
        %1571 = vmatprep.mubr.bf16.mxu0 0
        %1572 = vmatmul.mubr.bf16.gmra.mrb[0].mxu0 %v1503
        %v1573 = vpop.f32.mrb[0].mxu0
        %v1574 = vadd.f32 0.0, %v1573
        %v1575 = vpop.f32.mrb[0].mxu0
        %v1576 = vpop.f32.mrb[0].mxu0
        %v1577 = vadd.f32 0.0, %v1576
        %v1578 = vpop.f32.mrb[0].mxu0
        %1579 = vmatprep.mubr.bf16.mxu0 0
        %1580 = vmatmul.mubr.bf16.gmra.mrb[0].mxu0 %v1506
        %v1581 = vpop.f32.mrb[0].mxu0
        %v1582 = vadd.f32 0.0, %v1581
        %v1583 = vpop.f32.mrb[0].mxu0
        %v1584 = vpop.f32.mrb[0].mxu0
        %v1585 = vadd.f32 0.0, %v1584
        %v1586 = vpop.f32.mrb[0].mxu0
        %1587 = vmatprep.mubr.bf16.mxu0 0
        %1588 = vmatmul.mubr.bf16.gmra.mrb[0].mxu0 %v1509
        %v1589 = vpop.f32.mrb[0].mxu0
        %v1590 = vadd.f32 0.0, %v1589
        %v1591 = vpop.f32.mrb[0].mxu0
        %v1592 = vpop.f32.mrb[0].mxu0
        %v1593 = vadd.f32 0.0, %v1592
        %v1594 = vpop.f32.mrb[0].mxu0
        %1595 = vmatprep.mubr.bf16.mxu0 0
        %1596 = vmatmul.mubr.bf16.gmra.mrb[0].mxu0 %v1512
        %v1597 = vpop.f32.mrb[0].mxu0
        %v1598 = vadd.f32 0.0, %v1597
        %v1599 = vpop.f32.mrb[0].mxu0
        %v1600 = vpop.f32.mrb[0].mxu0
        %v1601 = vadd.f32 0.0, %v1600
        %v1602 = vpop.f32.mrb[0].mxu0
        %1603 = vmatprep.mubr.bf16.mxu0 0
        %1604 = vmatmul.mubr.bf16.gmra.mrb[0].mxu0 %v1515
        %v1605 = vpop.f32.mrb[0].mxu0
        %v1606 = vadd.f32 0.0, %v1605
        %v1607 = vpop.f32.mrb[0].mxu0
        %v1608 = vpop.f32.mrb[0].mxu0
        %v1609 = vadd.f32 0.0, %v1608
        %v1610 = vpop.f32.mrb[0].mxu0
        %1611 = vmatprep.mubr.bf16.mxu0 0
        %1612 = vmatmul.mubr.bf16.gmra.mrb[0].mxu0 %v1518
        %v1613 = vpop.f32.mrb[0].mxu0
        %v1614 = vadd.f32 0.0, %v1613
        %v1615 = vpop.f32.mrb[0].mxu0
        %v1616 = vpop.f32.mrb[0].mxu0
        %v1617 = vadd.f32 0.0, %v1616
        %v1618 = vpop.f32.mrb[0].mxu0
        %1619 = vdwg.mxu0
        %v1620 = vadd.f32 %v1454, %v1558
        %v1621 = vadd.f32 %v1455, %v1561
        %v1622 = vadd.f32 %v1456, %v1566
        %v1623 = vadd.f32 %v1457, %v1569
        %v1624 = vadd.f32 %v1458, %v1574
        %v1625 = vadd.f32 %v1459, %v1577
        %v1626 = vadd.f32 %v1460, %v1582
        %v1627 = vadd.f32 %v1461, %v1585
        %v1628 = vadd.f32 %v1462, %v1590
        %v1629 = vadd.f32 %v1463, %v1593
        %v1630 = vadd.f32 %v1464, %v1598
        %v1631 = vadd.f32 %v1465, %v1601
        %v1632 = vadd.f32 %v1466, %v1606
        %v1633 = vadd.f32 %v1467, %v1609
        %v1634 = vadd.f32 %v1468, %v1614
        %v1635 = vadd.f32 %v1469, %v1617
        %v1636 = vadd.f32 %v1620, %v1621
        %v1637 = vadd.f32 %v1636, %v1622
        %v1638 = vadd.f32 %v1637, %v1623
        %v1639 = vadd.f32 %v1638, %v1624
        %v1640 = vadd.f32 %v1639, %v1625
        %v1641 = vadd.f32 %v1640, %v1626
        %v1642 = vadd.f32 %v1641, %v1627
        %v1643 = vadd.f32 %v1642, %v1628
        %v1644 = vadd.f32 %v1643, %v1629
        %v1645 = vadd.f32 %v1644, %v1630
        %v1646 = vadd.f32 %v1645, %v1631
        %v1647 = vadd.f32 %v1646, %v1632
        %v1648 = vadd.f32 %v1647, %v1633
        %v1649 = vadd.f32 %v1648, %v1634
        %v1650 = vadd.f32 %v1649, %v1635
        %v1651 = vrot.slane %v1650, 4
        %v1652 = vadd.f32 %v1650, %v1651
        %v1653 = vrot.slane %v1652, 2
        %v1654 = vadd.f32 %v1652, %v1653
        %v1655 = vrot.slane %v1654, 1
        %v1656 = vadd.f32 %v1654, %v1655
        %v1657 = vmul.f32 %v1620, %v1620
        %v1658 = vmul.f32 %v1621, %v1621
        %v1659 = vmul.f32 %v1622, %v1622
        %v1660 = vmul.f32 %v1623, %v1623
        %v1661 = vmul.f32 %v1624, %v1624
        %v1662 = vmul.f32 %v1625, %v1625
        %v1663 = vmul.f32 %v1626, %v1626
        %v1664 = vmul.f32 %v1627, %v1627
        %v1665 = vmul.f32 %v1628, %v1628
        %v1666 = vmul.f32 %v1629, %v1629
        %v1667 = vmul.f32 %v1630, %v1630
        %v1668 = vmul.f32 %v1631, %v1631
        %v1669 = vmul.f32 %v1632, %v1632
        %v1670 = vmul.f32 %v1633, %v1633
        %v1671 = vmul.f32 %v1634, %v1634
        %v1672 = vmul.f32 %v1635, %v1635
        %v1673 = vadd.f32 %v1657, %v1658
        %v1674 = vadd.f32 %v1673, %v1659
        %v1675 = vadd.f32 %v1674, %v1660
        %v1676 = vadd.f32 %v1675, %v1661
        %v1677 = vadd.f32 %v1676, %v1662
        %v1678 = vadd.f32 %v1677, %v1663
        %v1679 = vadd.f32 %v1678, %v1664
        %v1680 = vadd.f32 %v1679, %v1665
        %v1681 = vadd.f32 %v1680, %v1666
        %v1682 = vadd.f32 %v1681, %v1667
        %v1683 = vadd.f32 %v1682, %v1668
        %v1684 = vadd.f32 %v1683, %v1669
        %v1685 = vadd.f32 %v1684, %v1670
        %v1686 = vadd.f32 %v1685, %v1671
        %v1687 = vadd.f32 %v1686, %v1672
        %v1688 = vrot.slane %v1687, 4
        %v1689 = vadd.f32 %v1687, %v1688
        %v1690 = vrot.slane %v1689, 2
        %v1691 = vadd.f32 %v1689, %v1690
        %v1692 = vrot.slane %v1691, 1
        %v1693 = vadd.f32 %v1691, %v1692
        %vm1694 = vcmask 1040384
        %v1695 = vsel %vm1694, %v1656, %v1693
        %1696 = vst [vmem:[%s160] sm:$0x3] %v1695
        %s1697 = sand.u32 %s87, 1
        %s1698 = scalar_lea.sflag [#allocation3], %s1697
        %s1699 = sand.u32 %s87, 1
        %s1700 = smul.addr %s1699, 2
        %s1701 = scalar_lea.vmem [#allocation2], %s1700
        // Predicated region
        $region29: #{tpu_custom_call.1} parent=27 // pred_check
          %p1702 = pneg %p97
        $region30: #{tpu_custom_call.1} parent=27 // pred_check_branch
          %1704 = sbr.rel (%p1702) target = $region32
        $region31: #{tpu_custom_call.1} parent=27 // pred_region
          %s1706 = ssub.s32 32, 32
          %1707 = vsyncadd %s1698, %s1706
          %s1708 = smul.addr %s20, 2
          %s1709 = sadd.s32 %s21, %s1708
          %s1710 = smul.addr %s1709, 32
          %s1711 = scalar_lea.hbm %s2, %s1710
          %s1713 = sshll.u32 %s1701, 4
          %s1714 = int_to_ptr.vmem [resolvable:$true] %s1713
          %1716 = dma.vmem_to_hbm [thread:$0]  %s1714, 32, %s1711, %s1698
        $region32: #{tpu_custom_call.1} parent=27 // pred_fallthru
          _
      $region28: #{tpu_custom_call.1} parent=5 // pred_fallthru
        _
      %p1717 = scmp.le.s32.totalorder 2, %s11
      // Predicated region
      $region33: #{tpu_custom_call.1} parent=5 // pred_check
        %p1718 = pneg %p1717
      $region34: #{tpu_custom_call.1} parent=5 // pred_check_branch
        %1720 = sbr.rel (%p1718) target = $region36
      $region35: #{tpu_custom_call.1} parent=5 // pred_region
        %s1721 = ssub.s32 %s11, 2
        // Predicated region
        $region37: #{tpu_custom_call.1} parent=35 // pred_check
          %p1722 = pneg %p103
        $region38: #{tpu_custom_call.1} parent=35 // pred_check_branch
          %1724 = sbr.rel (%p1722) target = $region40
        $region39: #{tpu_custom_call.1} parent=35 // pred_region
          %s1725 = sand.u32 %s88, 1
          %s1726 = scalar_lea.sflag [#allocation3], %s1725
          %s1727 = sand.u32 %s88, 1
          %s1728 = smul.addr %s1727, 2
          %s1729 = scalar_lea.vmem [#allocation2], %s1728
          %1730 = dma.done %s1726, 32
        $region40: #{tpu_custom_call.1} parent=35 // pred_fallthru
          _
      $region36: #{tpu_custom_call.1} parent=5 // pred_fallthru
        _
    $region6: #{tpu_custom_call.1} parent=1 // loop_footer
      %s15 = sadd.s32 1, %s11
    $region7: #{tpu_custom_call.1} parent=1 // loop_footer_branch
      %10 = sbr.rel target = $region3
    $region8: #{tpu_custom_call.1} parent=1 // loop_exit
      _
    %1731 = vsyncpa [#allocation3], 1
    %s1732 = scalar_lea.sflag [#allocation3], 1
    %1733 = vsyncpa %s1732, 1

</llo_original>
